<compile_context>
chip_gen: v7x
topology: tpu7x:2x2x1
jax: 0.10.0
libtpu: 0.0.40
codegen_flags: <defaults>
</compile_context>

<pallas_src>
import functools
import math

import jax
import jax.numpy as jnp
from jax.experimental import pallas as pl
from jax.experimental.pallas import tpu as pltpu

# ---- model config (small, consistent with the module: head_dim = D // H, ffn = n * D) ----
BATCH = 2
SEQ = 8
EMBED = 32
NUM_HEADS = 4
HEAD_DIM = EMBED // NUM_HEADS           # 8
FFN_MULT = 4
FFN = FFN_MULT * EMBED                  # 128
LN_EPS = 1e-5


def _layernorm(v, g, b):
    mu = jnp.mean(v, axis=-1, keepdims=True)
    var = jnp.mean((v - mu) ** 2, axis=-1, keepdims=True)
    return (v - mu) * jax.lax.rsqrt(var + LN_EPS) * g + b


def _gelu_exact(x):
    # nn.GELU() default = exact erf formulation
    return 0.5 * x * (1.0 + jax.lax.erf(x * (1.0 / math.sqrt(2.0))))


def decoder_layer_kernel(
    x_ref, mask_ref, vec_ref, wqkv_ref, wo_ref, w1_ref, b1_ref, w2_ref,
    out_ref,
    *, seq, num_heads, head_dim,
):
    f32, bf16 = jnp.float32, jnp.bfloat16
    D = num_heads * head_dim

    x = x_ref[...].astype(f32)            # (L, D)    residual stream (f32)
    mask = mask_ref[...].astype(f32)      # (H, L, L) additive attention bias
    vecs = vec_ref[...].astype(f32)       # (6, D)    packed small parameter vectors

    ln1_g, ln1_b = vecs[0:1, :], vecs[1:2, :]
    bo = vecs[2:3, :]
    ln2_g, ln2_b = vecs[3:4, :], vecs[4:5, :]
    b2 = vecs[5:6, :]

    # ---- self_attn_layer_norm ----
    xn = _layernorm(x, ln1_g, ln1_b)                              # (L, D) f32

    # ---- fused, head-batched QKV projection (1/sqrt(Dh) already folded into Wq) ----
    # wqkv_ref is (H, 3*Dh, D) head-major, contraction on the last dim (NT form), bf16.
    xn3 = jnp.broadcast_to(xn.astype(bf16)[None], (num_heads, seq, D))
    qkv = jnp.einsum("hqd,hed->hqe", xn3, wqkv_ref[...],
                     preferred_element_type=f32)                  # (H, L, 3*Dh) f32
    q = qkv[:, :, 0:head_dim]
    k = qkv[:, :, head_dim:2 * head_dim]
    v = qkv[:, :, 2 * head_dim:3 * head_dim]

    # ---- head-batched attention (activation x activation kept in f32) ----
    logits = jnp.einsum("hqd,hkd->hqk", q, k,
                        preferred_element_type=f32) + mask        # (H, L, L)
    m = jnp.max(logits, axis=-1, keepdims=True)
    m = jnp.maximum(m, -1e30)                 # guard fully-masked (-inf) rows
    p = jnp.exp(logits - m)
    denom = jnp.sum(p, axis=-1, keepdims=True)
    p = p / jnp.maximum(denom, 1e-30)         # exact normalization (no approx reciprocal)
    o = jnp.einsum("hqk,hkd->hqd", p, v,
                   preferred_element_type=f32)                    # (H, L, Dh)

    # ---- output projection, head-batched, reduced over heads ----
    # wo_ref is (H, D, Dh): wo_ref[h, e, d] = Wo[h*Dh + d, e]  (no scratch / lane stores)
    attn_h = jnp.einsum("hqd,hed->hqe", o.astype(bf16), wo_ref[...],
                        preferred_element_type=f32)               # (H, L, D)
    attn_out = jnp.sum(attn_h, axis=0) + bo                       # (L, D)

    # ---- residual 1  (dropout_module is identity in eval) ----
    x1 = x + attn_out

    # ---- final_layer_norm + Transition (FFN) ----
    xn2 = _layernorm(x1, ln2_g, ln2_b)
    h1 = jnp.dot(xn2.astype(bf16), w1_ref[...],
                 preferred_element_type=f32) + b1_ref[...]
    h1 = _gelu_exact(h1)
    ffn_out = jnp.dot(h1.astype(bf16), w2_ref[...],
                      preferred_element_type=f32) + b2

    # ---- residual 2 ----
    out_ref[...] = (x1 + ffn_out).astype(out_ref.dtype)


def transformer_decoder_layer(x, mask, params):
    """x: (B, L, D) f32; mask: (B, H, L, L) f32 additive bias; params: dict of f32 weights."""
    B, L, D = x.shape
    H = mask.shape[1]
    Dh = D // H
    F = params["w1"].shape[1]
    bf16 = jnp.bfloat16
    scale = Dh ** (-0.5)

    # ---- wrapper-side layout / precision plumbing (plain XLA, outside the kernel) ----
    def per_head_nt(w):            # (D, H*Dh) -> (H, Dh, D): w[d, h*Dh+j] -> out[h, j, d]
        return jnp.transpose(w.reshape(D, H, Dh), (1, 2, 0))

    # fused QKV, head-major, NT layout, scale folded into the Q block, stored bf16
    wqkv_heads = jnp.concatenate(
        [per_head_nt(params["wq"] * scale),
         per_head_nt(params["wk"]),
         per_head_nt(params["wv"])], axis=1).astype(bf16)          # (H, 3*Dh, D)
    # Wo head-major NT: wo_heads[h, e, d] = Wo[h*Dh + d, e], stored bf16
    wo_heads = jnp.transpose(params["wo"].reshape(H, Dh, D), (0, 2, 1)).astype(bf16)
    w1 = params["w1"].astype(bf16)                                 # (D, F)
    w2 = params["w2"].astype(bf16)                                 # (F, D)
    b1 = params["b1"].reshape(1, F)                                # f32
    # six small (D,) vectors packed into one (6, D) f32 input (fewer DMAs)
    vecs = jnp.stack([params["ln1_g"], params["ln1_b"], params["bo"],
                      params["ln2_g"], params["ln2_b"], params["b2"]], axis=0)

    kernel = functools.partial(decoder_layer_kernel, seq=L, num_heads=H, head_dim=Dh)

    return pl.pallas_call(
        kernel,
        out_shape=jax.ShapeDtypeStruct((B, L, D), x.dtype),
        grid=(B,),                       # batch axis: sharded across TCs on v7x
        in_specs=[
            pl.BlockSpec((None, L, D), lambda b: (b, 0, 0)),         # x     (per batch)
            pl.BlockSpec((None, H, L, L), lambda b: (b, 0, 0, 0)),   # mask  (per batch)
            pl.BlockSpec((6, D), lambda b: (0, 0)),                  # LN/bias vectors
            pl.BlockSpec((H, 3 * Dh, D), lambda b: (0, 0, 0)),       # Wqkv  (resident)
            pl.BlockSpec((H, D, Dh), lambda b: (0, 0, 0)),           # Wo    (resident)
            pl.BlockSpec((D, F), lambda b: (0, 0)),                  # W1    (resident)
            pl.BlockSpec((1, F), lambda b: (0, 0)),                  # b1    (resident)
            pl.BlockSpec((F, D), lambda b: (0, 0)),                  # W2    (resident)
        ],
        out_specs=pl.BlockSpec((None, L, D), lambda b: (b, 0, 0)),
        compiler_params=pltpu.CompilerParams(dimension_semantics=("parallel",)),
    )(x, mask, vecs, wqkv_heads, wo_heads, w1, b1, w2)


# ---------------- pure-JAX reference (mirrors the bf16 weight / matmul-input policy) -----
def reference(x, mask, p):
    f32, bf16 = jnp.float32, jnp.bfloat16
    B, L, D = x.shape
    H, Dh = NUM_HEADS, HEAD_DIM

    # bf16 weight storage mirrors the kernel (scale folded into Wq).
    wq = (p["wq"] * Dh ** (-0.5)).astype(bf16)
    wk = p["wk"].astype(bf16)
    wv = p["wv"].astype(bf16)
    wo = p["wo"].astype(bf16)
    w1 = p["w1"].astype(bf16)
    w2 = p["w2"].astype(bf16)

    xn = _layernorm(x, p["ln1_g"], p["ln1_b"])
    xnb = xn.astype(bf16)
    q = jnp.einsum("bld,de->ble", xnb, wq, preferred_element_type=f32)
    k = jnp.einsum("bld,de->ble", xnb, wk, preferred_element_type=f32)
    v = jnp.einsum("bld,de->ble", xnb, wv, preferred_element_type=f32)
    q = q.reshape(B, L, H, Dh).transpose(0, 2, 1, 3)
    k = k.reshape(B, L, H, Dh).transpose(0, 2, 1, 3)
    v = v.reshape(B, L, H, Dh).transpose(0, 2, 1, 3)
    logits = jnp.einsum("bhqd,bhkd->bhqk", q, k) + mask
    attn = jax.nn.softmax(logits, axis=-1)
    o = jnp.einsum("bhqk,bhkd->bhqd", attn, v)
    o = o.transpose(0, 2, 1, 3).reshape(B, L, D)
    attn_out = jnp.einsum("bld,de->ble", o.astype(bf16), wo,
                          preferred_element_type=f32) + p["bo"]
    x1 = x + attn_out
    xn2 = _layernorm(x1, p["ln2_g"], p["ln2_b"])
    h1 = jnp.einsum("bld,df->blf", xn2.astype(bf16), w1,
                    preferred_element_type=f32) + p["b1"]
    h1 = _gelu_exact(h1)
    ffn_out = jnp.einsum("blf,fd->bld", h1.astype(bf16), w2,
                         preferred_element_type=f32) + p["b2"]
    return x1 + ffn_out


if __name__ == "__main__":
    key = jax.random.PRNGKey(0)
    keys = jax.random.split(key, 16)

    D, F = EMBED, FFN
    # Deterministic synthetic parameters (weights stored as (d_in, d_out)).
    # Non-trivial gamma/beta/biases so the packed-vector path is actually exercised.
    params = {
        "ln1_g": 1.0 + 0.1 * jax.random.normal(keys[8], (D,), jnp.float32),
        "ln1_b": 0.1 * jax.random.normal(keys[9], (D,), jnp.float32),
        "wq": jax.random.normal(keys[0], (D, D), jnp.float32) * (1.0 / math.sqrt(D)),
        "wk": jax.random.normal(keys[1], (D, D), jnp.float32) * (1.0 / math.sqrt(D)),
        "wv": jax.random.normal(keys[2], (D, D), jnp.float32) * (1.0 / math.sqrt(D)),
        "wo": jax.random.normal(keys[3], (D, D), jnp.float32) * (1.0 / math.sqrt(D)),
        "bo": 0.1 * jax.random.normal(keys[10], (D,), jnp.float32),
        "ln2_g": 1.0 + 0.1 * jax.random.normal(keys[11], (D,), jnp.float32),
        "ln2_b": 0.1 * jax.random.normal(keys[12], (D,), jnp.float32),
        "w1": jax.random.normal(keys[4], (D, F), jnp.float32) * (1.0 / math.sqrt(D)),
        "b1": 0.1 * jax.random.normal(keys[13], (F,), jnp.float32),
        "w2": jax.random.normal(keys[5], (F, D), jnp.float32) * (1.0 / math.sqrt(F)),
        "b2": 0.1 * jax.random.normal(keys[14], (D,), jnp.float32),
    }

    x = jax.random.normal(keys[6], (BATCH, SEQ, EMBED), jnp.float32)
    # additive attention bias (self_attn_mask); softmax_dropout adds it to the logits
    mask = 0.1 * jax.random.normal(keys[7], (BATCH, NUM_HEADS, SEQ, SEQ), jnp.float32)

    out = transformer_decoder_layer(x, mask, params)
    out = jax.block_until_ready(out)

    ref = reference(x, mask, params)
    # Both kernel and reference use the same bf16 weights / bf16 matmul inputs with f32
    # accumulation, so the remaining differences are accumulation order + rare bf16
    # double-rounding flips (~1e-4 worst case); 2e-3 gives ample margin.
    assert jnp.allclose(out, ref, atol=2e-3, rtol=2e-3), (
        float(jnp.max(jnp.abs(out - ref)))
    )

    # TODO(synk): dropout / DropPath / attention softmax-dropout are identity here
    # (eval-mode semantics); training-mode stochastic masks are not implemented.
    print("KERNEL_OK")
</pallas_src>

<mosaic_0001>
module attributes {stable_mosaic.version = 11 : i64} {
  func.func @decoder_layer_kernel(%arg0: i32, %arg1: memref<1x8x32xf32, #tpu.memory_space<vmem>>, %arg2: memref<1x4x8x8xf32, #tpu.memory_space<vmem>>, %arg3: memref<6x32xf32, #tpu.memory_space<vmem>>, %arg4: memref<4x24x32xbf16, #tpu.memory_space<vmem>>, %arg5: memref<4x32x8xbf16, #tpu.memory_space<vmem>>, %arg6: memref<32x128xbf16, #tpu.memory_space<vmem>>, %arg7: memref<1x128xf32, #tpu.memory_space<vmem>>, %arg8: memref<128x32xbf16, #tpu.memory_space<vmem>>, %arg9: memref<1x8x32xf32, #tpu.memory_space<vmem>>) attributes {dimension_semantics = [#tpu.dimension_semantics<parallel>], iteration_bounds = array<i64: 2>, scalar_prefetch = 0 : i64, scratch_operands = 0 : i64, tpu.core_type = #tpu.core_type<tc>, window_params = [{transform_indices = @transform_0, window_bounds = array<i64: 1, 8, 32>}, {transform_indices = @transform_1, window_bounds = array<i64: 1, 4, 8, 8>}, {pipeline_mode = #tpu.pipeline_mode<synchronous>, transform_indices = @transform_2, window_bounds = array<i64: 6, 32>}, {pipeline_mode = #tpu.pipeline_mode<synchronous>, transform_indices = @transform_3, window_bounds = array<i64: 4, 24, 32>}, {pipeline_mode = #tpu.pipeline_mode<synchronous>, transform_indices = @transform_4, window_bounds = array<i64: 4, 32, 8>}, {pipeline_mode = #tpu.pipeline_mode<synchronous>, transform_indices = @transform_5, window_bounds = array<i64: 32, 128>}, {pipeline_mode = #tpu.pipeline_mode<synchronous>, transform_indices = @transform_6, window_bounds = array<i64: 1, 128>}, {pipeline_mode = #tpu.pipeline_mode<synchronous>, transform_indices = @transform_7, window_bounds = array<i64: 128, 32>}, {transform_indices = @transform_8, window_bounds = array<i64: 1, 8, 32>}]} {
    %c0 = arith.constant 0 : index
    %c0_0 = arith.constant 0 : index
    %c0_1 = arith.constant 0 : index
    %0 = vector.load %arg1[%c0, %c0_0, %c0_1] : memref<1x8x32xf32, #tpu.memory_space<vmem>>, vector<1x8x32xf32>
    %1 = vector.shape_cast %0 : vector<1x8x32xf32> to vector<8x32xf32>
    %c0_2 = arith.constant 0 : index
    %c0_3 = arith.constant 0 : index
    %c0_4 = arith.constant 0 : index
    %c0_5 = arith.constant 0 : index
    %2 = vector.load %arg2[%c0_2, %c0_3, %c0_4, %c0_5] : memref<1x4x8x8xf32, #tpu.memory_space<vmem>>, vector<1x4x8x8xf32>
    %3 = vector.shape_cast %2 : vector<1x4x8x8xf32> to vector<4x8x8xf32>
    %c0_6 = arith.constant 0 : index
    %c0_7 = arith.constant 0 : index
    %4 = vector.load %arg3[%c0_6, %c0_7] : memref<6x32xf32, #tpu.memory_space<vmem>>, vector<6x32xf32>
    %5 = vector.extract_strided_slice %4 {offsets = [0, 0], sizes = [1, 32], strides = [1, 1]} : vector<6x32xf32> to vector<1x32xf32>
    %6 = vector.extract_strided_slice %4 {offsets = [1, 0], sizes = [1, 32], strides = [1, 1]} : vector<6x32xf32> to vector<1x32xf32>
    %7 = vector.extract_strided_slice %4 {offsets = [2, 0], sizes = [1, 32], strides = [1, 1]} : vector<6x32xf32> to vector<1x32xf32>
    %8 = vector.extract_strided_slice %4 {offsets = [3, 0], sizes = [1, 32], strides = [1, 1]} : vector<6x32xf32> to vector<1x32xf32>
    %9 = vector.extract_strided_slice %4 {offsets = [4, 0], sizes = [1, 32], strides = [1, 1]} : vector<6x32xf32> to vector<1x32xf32>
    %10 = vector.extract_strided_slice %4 {offsets = [5, 0], sizes = [1, 32], strides = [1, 1]} : vector<6x32xf32> to vector<1x32xf32>
    %cst = arith.constant dense<0.000000e+00> : vector<8xf32>
    %11 = vector.multi_reduction <add>, %1, %cst [1] : vector<8x32xf32> to vector<8xf32>
    %12 = vector.shape_cast %11 : vector<8xf32> to vector<8x1xf32>
    %cst_8 = arith.constant 3.200000e+01 : f32
    %13 = vector.broadcast %cst_8 : f32 to vector<8x1xf32>
    %14 = arith.divf %12, %13 : vector<8x1xf32>
    %15 = vector.broadcast %14 : vector<8x1xf32> to vector<8x32xf32>
    %16 = arith.subf %1, %15 : vector<8x32xf32>
    %17 = arith.mulf %16, %16 : vector<8x32xf32>
    %cst_9 = arith.constant dense<0.000000e+00> : vector<8xf32>
    %18 = vector.multi_reduction <add>, %17, %cst_9 [1] : vector<8x32xf32> to vector<8xf32>
    %19 = vector.shape_cast %18 : vector<8xf32> to vector<8x1xf32>
    %cst_10 = arith.constant 3.200000e+01 : f32
    %20 = vector.broadcast %cst_10 : f32 to vector<8x1xf32>
    %21 = arith.divf %19, %20 : vector<8x1xf32>
    %22 = vector.broadcast %14 : vector<8x1xf32> to vector<8x32xf32>
    %23 = arith.subf %1, %22 : vector<8x32xf32>
    %cst_11 = arith.constant 9.99999974E-6 : f32
    %24 = vector.broadcast %cst_11 : f32 to vector<8x1xf32>
    %25 = arith.addf %21, %24 : vector<8x1xf32>
    %26 = math.rsqrt %25 : vector<8x1xf32>
    %27 = vector.broadcast %26 : vector<8x1xf32> to vector<8x32xf32>
    %28 = arith.mulf %23, %27 : vector<8x32xf32>
    %29 = vector.broadcast %5 : vector<1x32xf32> to vector<8x32xf32>
    %30 = arith.mulf %28, %29 : vector<8x32xf32>
    %31 = vector.broadcast %6 : vector<1x32xf32> to vector<8x32xf32>
    %32 = arith.addf %30, %31 : vector<8x32xf32>
    %33 = arith.truncf %32 : vector<8x32xf32> to vector<8x32xbf16>
    %34 = vector.shape_cast %33 : vector<8x32xbf16> to vector<1x8x32xbf16>
    %35 = vector.shape_cast %34 : vector<1x8x32xbf16> to vector<1x8x32xbf16>
    %36 = vector.broadcast %35 : vector<1x8x32xbf16> to vector<4x8x32xbf16>
    %c0_12 = arith.constant 0 : index
    %c0_13 = arith.constant 0 : index
    %c0_14 = arith.constant 0 : index
    %37 = vector.load %arg4[%c0_12, %c0_13, %c0_14] : memref<4x24x32xbf16, #tpu.memory_space<vmem>>, vector<4x24x32xbf16>
    "tpu.trace_start"() <{level = 10 : i32, message = "hqd,hed->hqe"}> : () -> ()
    %cst_15 = arith.constant dense<0.000000e+00> : vector<4x8x24xf32>
    %38 = tpu.matmul %36, %37, %cst_15 {dimension_numbers = #tpu.dot_dimension_numbers<[2], [2], [1], [1], [0, 0, 0, 1, 1, 1], [0], [0]>} : vector<4x8x32xbf16>, vector<4x24x32xbf16>, vector<4x8x24xf32> -> vector<4x8x24xf32>
    "tpu.trace_stop"() : () -> ()
    %39 = vector.extract_strided_slice %38 {offsets = [0, 0, 0], sizes = [4, 8, 8], strides = [1, 1, 1]} : vector<4x8x24xf32> to vector<4x8x8xf32>
    %40 = vector.extract_strided_slice %38 {offsets = [0, 0, 8], sizes = [4, 8, 8], strides = [1, 1, 1]} : vector<4x8x24xf32> to vector<4x8x8xf32>
    %41 = vector.extract_strided_slice %38 {offsets = [0, 0, 16], sizes = [4, 8, 8], strides = [1, 1, 1]} : vector<4x8x24xf32> to vector<4x8x8xf32>
    "tpu.trace_start"() <{level = 10 : i32, message = "hqd,hkd->hqk"}> : () -> ()
    %cst_16 = arith.constant dense<0.000000e+00> : vector<4x8x8xf32>
    %42 = tpu.matmul %39, %40, %cst_16 {dimension_numbers = #tpu.dot_dimension_numbers<[2], [2], [1], [1], [0, 0, 0, 1, 1, 1], [0], [0]>} : vector<4x8x8xf32>, vector<4x8x8xf32>, vector<4x8x8xf32> -> vector<4x8x8xf32>
    "tpu.trace_stop"() : () -> ()
    %43 = arith.addf %42, %3 : vector<4x8x8xf32>
    %cst_17 = arith.constant dense<0xFF800000> : vector<4x8xf32>
    %44 = vector.multi_reduction <maximumf>, %43, %cst_17 [2] : vector<4x8x8xf32> to vector<4x8xf32>
    %45 = vector.shape_cast %44 : vector<4x8xf32> to vector<4x8x1xf32>
    %cst_18 = arith.constant -1.000000e+30 : f32
    %46 = vector.broadcast %cst_18 : f32 to vector<4x8x1xf32>
    %47 = arith.maximumf %45, %46 : vector<4x8x1xf32>
    %48 = vector.broadcast %47 : vector<4x8x1xf32> to vector<4x8x8xf32>
    %49 = arith.subf %43, %48 : vector<4x8x8xf32>
    %50 = math.exp %49 : vector<4x8x8xf32>
    %cst_19 = arith.constant dense<0.000000e+00> : vector<4x8xf32>
    %51 = vector.multi_reduction <add>, %50, %cst_19 [2] : vector<4x8x8xf32> to vector<4x8xf32>
    %52 = vector.shape_cast %51 : vector<4x8xf32> to vector<4x8x1xf32>
    %cst_20 = arith.constant 1.000000e-30 : f32
    %53 = vector.broadcast %cst_20 : f32 to vector<4x8x1xf32>
    %54 = arith.maximumf %52, %53 : vector<4x8x1xf32>
    %55 = vector.broadcast %54 : vector<4x8x1xf32> to vector<4x8x8xf32>
    %56 = arith.divf %50, %55 : vector<4x8x8xf32>
    "tpu.trace_start"() <{level = 10 : i32, message = "hqk,hkd->hqd"}> : () -> ()
    %cst_21 = arith.constant dense<0.000000e+00> : vector<4x8x8xf32>
    %57 = tpu.matmul %56, %41, %cst_21 {dimension_numbers = #tpu.dot_dimension_numbers<[2], [1], [1], [2], [0, 0, 0, 1, 1, 2], [0], [0]>} : vector<4x8x8xf32>, vector<4x8x8xf32>, vector<4x8x8xf32> -> vector<4x8x8xf32>
    "tpu.trace_stop"() : () -> ()
    %58 = arith.truncf %57 : vector<4x8x8xf32> to vector<4x8x8xbf16>
    %c0_22 = arith.constant 0 : index
    %c0_23 = arith.constant 0 : index
    %c0_24 = arith.constant 0 : index
    %59 = vector.load %arg5[%c0_22, %c0_23, %c0_24] : memref<4x32x8xbf16, #tpu.memory_space<vmem>>, vector<4x32x8xbf16>
    "tpu.trace_start"() <{level = 10 : i32, message = "hqd,hed->hqe"}> : () -> ()
    %cst_25 = arith.constant dense<0.000000e+00> : vector<4x8x32xf32>
    %60 = tpu.matmul %58, %59, %cst_25 {dimension_numbers = #tpu.dot_dimension_numbers<[2], [2], [1], [1], [0, 0, 0, 1, 1, 1], [0], [0]>} : vector<4x8x8xbf16>, vector<4x32x8xbf16>, vector<4x8x32xf32> -> vector<4x8x32xf32>
    "tpu.trace_stop"() : () -> ()
    %cst_26 = arith.constant dense<0.000000e+00> : vector<8x32xf32>
    %61 = vector.multi_reduction <add>, %60, %cst_26 [0] : vector<4x8x32xf32> to vector<8x32xf32>
    %62 = vector.broadcast %7 : vector<1x32xf32> to vector<8x32xf32>
    %63 = arith.addf %61, %62 : vector<8x32xf32>
    %64 = arith.addf %1, %63 : vector<8x32xf32>
    %cst_27 = arith.constant dense<0.000000e+00> : vector<8xf32>
    %65 = vector.multi_reduction <add>, %64, %cst_27 [1] : vector<8x32xf32> to vector<8xf32>
    %66 = vector.shape_cast %65 : vector<8xf32> to vector<8x1xf32>
    %cst_28 = arith.constant 3.200000e+01 : f32
    %67 = vector.broadcast %cst_28 : f32 to vector<8x1xf32>
    %68 = arith.divf %66, %67 : vector<8x1xf32>
    %69 = vector.broadcast %68 : vector<8x1xf32> to vector<8x32xf32>
    %70 = arith.subf %64, %69 : vector<8x32xf32>
    %71 = arith.mulf %70, %70 : vector<8x32xf32>
    %cst_29 = arith.constant dense<0.000000e+00> : vector<8xf32>
    %72 = vector.multi_reduction <add>, %71, %cst_29 [1] : vector<8x32xf32> to vector<8xf32>
    %73 = vector.shape_cast %72 : vector<8xf32> to vector<8x1xf32>
    %cst_30 = arith.constant 3.200000e+01 : f32
    %74 = vector.broadcast %cst_30 : f32 to vector<8x1xf32>
    %75 = arith.divf %73, %74 : vector<8x1xf32>
    %76 = vector.broadcast %68 : vector<8x1xf32> to vector<8x32xf32>
    %77 = arith.subf %64, %76 : vector<8x32xf32>
    %cst_31 = arith.constant 9.99999974E-6 : f32
    %78 = vector.broadcast %cst_31 : f32 to vector<8x1xf32>
    %79 = arith.addf %75, %78 : vector<8x1xf32>
    %80 = math.rsqrt %79 : vector<8x1xf32>
    %81 = vector.broadcast %80 : vector<8x1xf32> to vector<8x32xf32>
    %82 = arith.mulf %77, %81 : vector<8x32xf32>
    %83 = vector.broadcast %8 : vector<1x32xf32> to vector<8x32xf32>
    %84 = arith.mulf %82, %83 : vector<8x32xf32>
    %85 = vector.broadcast %9 : vector<1x32xf32> to vector<8x32xf32>
    %86 = arith.addf %84, %85 : vector<8x32xf32>
    %87 = arith.truncf %86 : vector<8x32xf32> to vector<8x32xbf16>
    %c0_32 = arith.constant 0 : index
    %c0_33 = arith.constant 0 : index
    %88 = vector.load %arg6[%c0_32, %c0_33] : memref<32x128xbf16, #tpu.memory_space<vmem>>, vector<32x128xbf16>
    %cst_34 = arith.constant dense<0.000000e+00> : vector<8x128xf32>
    %89 = tpu.matmul %87, %88, %cst_34 {dimension_numbers = #tpu.dot_dimension_numbers<[1], [0], [0], [1], [0, 0, 1, 1], [], []>} : vector<8x32xbf16>, vector<32x128xbf16>, vector<8x128xf32> -> vector<8x128xf32>
    %c0_35 = arith.constant 0 : index
    %c0_36 = arith.constant 0 : index
    %90 = vector.load %arg7[%c0_35, %c0_36] : memref<1x128xf32, #tpu.memory_space<vmem>>, vector<1x128xf32>
    %91 = vector.broadcast %90 : vector<1x128xf32> to vector<8x128xf32>
    %92 = arith.addf %89, %91 : vector<8x128xf32>
    %cst_37 = arith.constant 5.000000e-01 : f32
    %93 = vector.broadcast %cst_37 : f32 to vector<8x128xf32>
    %94 = arith.mulf %93, %92 : vector<8x128xf32>
    %cst_38 = arith.constant 0.707106769 : f32
    %95 = vector.broadcast %cst_38 : f32 to vector<8x128xf32>
    %96 = arith.mulf %92, %95 : vector<8x128xf32>
    %97 = math.erf %96 : vector<8x128xf32>
    %cst_39 = arith.constant 1.000000e+00 : f32
    %98 = vector.broadcast %cst_39 : f32 to vector<8x128xf32>
    %99 = arith.addf %98, %97 : vector<8x128xf32>
    %100 = arith.mulf %94, %99 : vector<8x128xf32>
    %101 = arith.truncf %100 : vector<8x128xf32> to vector<8x128xbf16>
    %c0_40 = arith.constant 0 : index
    %c0_41 = arith.constant 0 : index
    %102 = vector.load %arg8[%c0_40, %c0_41] : memref<128x32xbf16, #tpu.memory_space<vmem>>, vector<128x32xbf16>
    %cst_42 = arith.constant dense<0.000000e+00> : vector<8x32xf32>
    %103 = tpu.matmul %101, %102, %cst_42 {dimension_numbers = #tpu.dot_dimension_numbers<[1], [0], [0], [1], [0, 0, 1, 1], [], []>} : vector<8x128xbf16>, vector<128x32xbf16>, vector<8x32xf32> -> vector<8x32xf32>
    %104 = vector.broadcast %10 : vector<1x32xf32> to vector<8x32xf32>
    %105 = arith.addf %103, %104 : vector<8x32xf32>
    %106 = arith.addf %64, %105 : vector<8x32xf32>
    %c0_43 = arith.constant 0 : index
    %c0_44 = arith.constant 0 : index
    %c0_45 = arith.constant 0 : index
    %107 = vector.load %arg9[%c0_43, %c0_44, %c0_45] : memref<1x8x32xf32, #tpu.memory_space<vmem>>, vector<1x8x32xf32>
    %108 = vector.shape_cast %107 : vector<1x8x32xf32> to vector<8x32xf32>
    %109 = vector.shape_cast %106 : vector<8x32xf32> to vector<1x8x32xf32>
    tpu.vector_store %arg9[%c0_43, %c0_44, %c0_45], %109 {strides = array<i32>} : memref<1x8x32xf32, #tpu.memory_space<vmem>>, vector<1x8x32xf32>,
    return
  }
  func.func @transform_0(%arg0: i32) -> (i32, i32, i32) {
    %c0_i32 = arith.constant 0 : i32
    %c0_i32_0 = arith.constant 0 : i32
    %c0_i32_1 = arith.constant 0 : i32
    return %arg0, %c0_i32, %c0_i32_0 : i32, i32, i32
  }
  func.func @transform_1(%arg0: i32) -> (i32, i32, i32, i32) {
    %c0_i32 = arith.constant 0 : i32
    %c0_i32_0 = arith.constant 0 : i32
    %c0_i32_1 = arith.constant 0 : i32
    %c0_i32_2 = arith.constant 0 : i32
    return %arg0, %c0_i32, %c0_i32_0, %c0_i32_1 : i32, i32, i32, i32
  }
  func.func @transform_2(%arg0: i32) -> (i32, i32) {
    %c0_i32 = arith.constant 0 : i32
    %c0_i32_0 = arith.constant 0 : i32
    %c0_i32_1 = arith.constant 0 : i32
    return %c0_i32, %c0_i32_0 : i32, i32
  }
  func.func @transform_3(%arg0: i32) -> (i32, i32, i32) {
    %c0_i32 = arith.constant 0 : i32
    %c0_i32_0 = arith.constant 0 : i32
    %c0_i32_1 = arith.constant 0 : i32
    %c0_i32_2 = arith.constant 0 : i32
    return %c0_i32, %c0_i32_0, %c0_i32_1 : i32, i32, i32
  }
  func.func @transform_4(%arg0: i32) -> (i32, i32, i32) {
    %c0_i32 = arith.constant 0 : i32
    %c0_i32_0 = arith.constant 0 : i32
    %c0_i32_1 = arith.constant 0 : i32
    %c0_i32_2 = arith.constant 0 : i32
    return %c0_i32, %c0_i32_0, %c0_i32_1 : i32, i32, i32
  }
  func.func @transform_5(%arg0: i32) -> (i32, i32) {
    %c0_i32 = arith.constant 0 : i32
    %c0_i32_0 = arith.constant 0 : i32
    %c0_i32_1 = arith.constant 0 : i32
    return %c0_i32, %c0_i32_0 : i32, i32
  }
  func.func @transform_6(%arg0: i32) -> (i32, i32) {
    %c0_i32 = arith.constant 0 : i32
    %c0_i32_0 = arith.constant 0 : i32
    %c0_i32_1 = arith.constant 0 : i32
    return %c0_i32, %c0_i32_0 : i32, i32
  }
  func.func @transform_7(%arg0: i32) -> (i32, i32) {
    %c0_i32 = arith.constant 0 : i32
    %c0_i32_0 = arith.constant 0 : i32
    %c0_i32_1 = arith.constant 0 : i32
    return %c0_i32, %c0_i32_0 : i32, i32
  }
  func.func @transform_8(%arg0: i32) -> (i32, i32, i32) {
    %c0_i32 = arith.constant 0 : i32
    %c0_i32_0 = arith.constant 0 : i32
    %c0_i32_1 = arith.constant 0 : i32
    return %arg0, %c0_i32, %c0_i32_0 : i32, i32, i32
  }
}

</mosaic_0001>

<llo_original>
// kernel: tpu_custom_call.1
$region0: #{tpu_custom_call.1}
  #allocation0 [shape = 'u32[]', space=smem, size = 0x4, offset = 0x4, fixed_abs, tag = 'smem constant byte address 0x4 - core index']
  #allocation1 [shape = 'u32[144,128]{1,0:T(1,128)}', space=vmem, size = 0x12000, scoped, tag = 'internal scratch']
  %s0 = inlined_call_operand.vmem [shape: f32[2,8,32], index: 0, kind: input, shape index: {}]
  %s1 = inlined_call_operand.vmem [shape: f32[2,4,8,8], index: 1, kind: input, shape index: {}]
  %s2 = inlined_call_operand.hbm [shape: f32[6,32], index: 2, kind: input, shape index: {}]
  %s3 = inlined_call_operand.vmem [shape: bf16[4,24,32], index: 3, kind: input, shape index: {}]
  %s4 = inlined_call_operand.vmem [shape: bf16[4,32,8], index: 4, kind: input, shape index: {}]
  %s5 = inlined_call_operand.vmem [shape: bf16[32,128], index: 5, kind: input, shape index: {}]
  %s6 = inlined_call_operand.vmem [shape: f32[1,128], index: 6, kind: input, shape index: {}]
  %s7 = inlined_call_operand.vmem [shape: bf16[128,32], index: 7, kind: input, shape index: {}]
  %s8 = inlined_call_operand.hbm [shape: f32[2,8,32], index: 8, kind: output, shape index: {}]
  %s9 = sld [smem:[#allocation0]]
  $region69: #{tpu_custom_call.1} parent=0
    _
  %s11 = ssub.s32 1, %s9
  %s12 = scalar_select 0, %s11, %s9
  $region1: #{tpu_custom_call.1} parent=0
    #allocation2 [shape = 'u8[4096]{0}', space=vmem, size = 0x1000, scoped, tag = 'input window, operand 2, single buffered']
    #allocation3 [shape = 's32[2]{0}', space=sflag, size = 0x8, scoped, tag = 'scoped memory for tpu_custom_call.1']
    #allocation4 [shape = 's32[2]{0}', space=sflag, size = 0x8, scoped, tag = 'scoped memory for tpu_custom_call.1']
    #allocation5 [shape = 'u8[8192]{0}', space=vmem, size = 0x2000, scoped, tag = 'output window, operand 0']
    %13 = vsyncpa [#allocation3], 0
    %14 = vsyncpa [#allocation4], 0
    %s15 = scalar_lea.sflag [#allocation4], 1
    %16 = vsyncpa %s15, 0
    loop: start=0, step=1, limit=4
    $region2: #{tpu_custom_call.1} parent=1 // loop_pre_header
      _
    $region3: #{tpu_custom_call.1} parent=1 // loop_header
      %s18 = sphi 0, %s22
      %p19 = scmp.ge.s32.totalorder %s18, 4
      %s28 = sphi 0, %s30
      %s31 = sphi 0, %s28
      %s32 = sphi 0, %s31
      %s48 = sphi 0, %s32
      %s54 = sphi 0, %s56
      %s57 = sphi 0, %s54
      %s58 = sphi 0, %s57
      %s74 = sphi 0, %s58
      %s78 = sphi 0, %s78
      %s80 = sphi 0, %s78
      %s81 = sphi 0, %s80
      %s95 = sphi 0, %s81
      %s99 = sphi 0, %s99
      %s101 = sphi 0, %s99
      %s102 = sphi 0, %s101
      %s116 = sphi 0, %s102
      %s120 = sphi 0, %s120
      %s122 = sphi 0, %s120
      %s123 = sphi 0, %s122
      %s137 = sphi 0, %s123
      %s141 = sphi 0, %s141
      %s143 = sphi 0, %s141
      %s144 = sphi 0, %s143
      %s158 = sphi 0, %s144
      %s162 = sphi 0, %s162
      %s164 = sphi 0, %s162
      %s165 = sphi 0, %s164
      %s179 = sphi 0, %s165
      %s183 = sphi 0, %s183
      %s185 = sphi 0, %s183
      %s186 = sphi 0, %s185
      %s200 = sphi 0, %s186
      %s206 = sphi 0, %s208
      %s209 = sphi 0, %s206
      %s210 = sphi 0, %s209
      %s226 = sphi 0, %s210
    $region4: #{tpu_custom_call.1} parent=1 // loop_header_branch
      %21 = sbr.rel (%p19) target = $region8
    $region5: #{tpu_custom_call.1} parent=1 // loop_body
      %s23 = ssub.s32 %s18, 1
      %s24 = ssub.s32 %s18, 2
      %s25 = sadd.s32 %s18, 1
      %s26 = ssub.s32 %s18, %s25
      %p27 = scmp.eq.s32.totalorder %s26, 0
      %s29 = sadd.s32 %s28, 1
      %s30 = scalar_select %p27, %s28, %s29
      %p33 = pneg %p27
      %p34 = scmp.eq.s32.totalorder %s18, 1
      %p35 = por %p33, %p34
      %p36 = scmp.ne.s32.totalorder %s28, %s31
      %p37 = scmp.eq.s32.totalorder %s18, 0
      %p38 = por %p36, %p37
      %p39 = scmp.ne.s32.totalorder %s28, %s31
      %p40 = scmp.eq.s32.totalorder %s23, 1
      %p41 = por %p39, %p40
      %p42 = scmp.ne.s32.totalorder %s31, %s32
      %p43 = scmp.eq.s32.totalorder %s23, 0
      %p44 = por %p42, %p43
      %p45 = scmp.ne.s32.totalorder %s31, %s32
      %p46 = scmp.eq.s32.totalorder %s24, 1
      %p47 = por %p45, %p46
      %p49 = scmp.ne.s32.totalorder %s32, %s48
      %p50 = scmp.eq.s32.totalorder %s24, 0
      %p51 = por %p49, %p50
      %s52 = ssub.s32 %s18, %s25
      %p53 = scmp.eq.s32.totalorder %s52, 0
      %s55 = sadd.s32 %s54, 1
      %s56 = scalar_select %p53, %s54, %s55
      %p59 = pneg %p53
      %p60 = scmp.eq.s32.totalorder %s18, 1
      %p61 = por %p59, %p60
      %p62 = scmp.ne.s32.totalorder %s54, %s57
      %p63 = scmp.eq.s32.totalorder %s18, 0
      %p64 = por %p62, %p63
      %p65 = scmp.ne.s32.totalorder %s54, %s57
      %p66 = scmp.eq.s32.totalorder %s23, 1
      %p67 = por %p65, %p66
      %p68 = scmp.ne.s32.totalorder %s57, %s58
      %p69 = scmp.eq.s32.totalorder %s23, 0
      %p70 = por %p68, %p69
      %p71 = scmp.ne.s32.totalorder %s57, %s58
      %p72 = scmp.eq.s32.totalorder %s24, 1
      %p73 = por %p71, %p72
      %p75 = scmp.ne.s32.totalorder %s58, %s74
      %p76 = scmp.eq.s32.totalorder %s24, 0
      %p77 = por %p75, %p76
      %s79 = sadd.s32 %s78, 1
      %p82 = scmp.eq.s32.totalorder %s18, 1
      %p83 = scmp.ne.s32.totalorder %s78, %s80
      %p84 = scmp.eq.s32.totalorder %s18, 0
      %p85 = por %p83, %p84
      %p86 = scmp.ne.s32.totalorder %s78, %s80
      %p87 = scmp.eq.s32.totalorder %s23, 1
      %p88 = por %p86, %p87
      %p89 = scmp.ne.s32.totalorder %s80, %s81
      %p90 = scmp.eq.s32.totalorder %s23, 0
      %p91 = por %p89, %p90
      %p92 = scmp.ne.s32.totalorder %s80, %s81
      %p93 = scmp.eq.s32.totalorder %s24, 1
      %p94 = por %p92, %p93
      %p96 = scmp.ne.s32.totalorder %s81, %s95
      %p97 = scmp.eq.s32.totalorder %s24, 0
      %p98 = por %p96, %p97
      %s100 = sadd.s32 %s99, 1
      %p103 = scmp.eq.s32.totalorder %s18, 1
      %p104 = scmp.ne.s32.totalorder %s99, %s101
      %p105 = scmp.eq.s32.totalorder %s18, 0
      %p106 = por %p104, %p105
      %p107 = scmp.ne.s32.totalorder %s99, %s101
      %p108 = scmp.eq.s32.totalorder %s23, 1
      %p109 = por %p107, %p108
      %p110 = scmp.ne.s32.totalorder %s101, %s102
      %p111 = scmp.eq.s32.totalorder %s23, 0
      %p112 = por %p110, %p111
      %p113 = scmp.ne.s32.totalorder %s101, %s102
      %p114 = scmp.eq.s32.totalorder %s24, 1
      %p115 = por %p113, %p114
      %p117 = scmp.ne.s32.totalorder %s102, %s116
      %p118 = scmp.eq.s32.totalorder %s24, 0
      %p119 = por %p117, %p118
      %s121 = sadd.s32 %s120, 1
      %p124 = scmp.eq.s32.totalorder %s18, 1
      %p125 = scmp.ne.s32.totalorder %s120, %s122
      %p126 = scmp.eq.s32.totalorder %s18, 0
      %p127 = por %p125, %p126
      %p128 = scmp.ne.s32.totalorder %s120, %s122
      %p129 = scmp.eq.s32.totalorder %s23, 1
      %p130 = por %p128, %p129
      %p131 = scmp.ne.s32.totalorder %s122, %s123
      %p132 = scmp.eq.s32.totalorder %s23, 0
      %p133 = por %p131, %p132
      %p134 = scmp.ne.s32.totalorder %s122, %s123
      %p135 = scmp.eq.s32.totalorder %s24, 1
      %p136 = por %p134, %p135
      %p138 = scmp.ne.s32.totalorder %s123, %s137
      %p139 = scmp.eq.s32.totalorder %s24, 0
      %p140 = por %p138, %p139
      %s142 = sadd.s32 %s141, 1
      %p145 = scmp.eq.s32.totalorder %s18, 1
      %p146 = scmp.ne.s32.totalorder %s141, %s143
      %p147 = scmp.eq.s32.totalorder %s18, 0
      %p148 = por %p146, %p147
      %p149 = scmp.ne.s32.totalorder %s141, %s143
      %p150 = scmp.eq.s32.totalorder %s23, 1
      %p151 = por %p149, %p150
      %p152 = scmp.ne.s32.totalorder %s143, %s144
      %p153 = scmp.eq.s32.totalorder %s23, 0
      %p154 = por %p152, %p153
      %p155 = scmp.ne.s32.totalorder %s143, %s144
      %p156 = scmp.eq.s32.totalorder %s24, 1
      %p157 = por %p155, %p156
      %p159 = scmp.ne.s32.totalorder %s144, %s158
      %p160 = scmp.eq.s32.totalorder %s24, 0
      %p161 = por %p159, %p160
      %s163 = sadd.s32 %s162, 1
      %p166 = scmp.eq.s32.totalorder %s18, 1
      %p167 = scmp.ne.s32.totalorder %s162, %s164
      %p168 = scmp.eq.s32.totalorder %s18, 0
      %p169 = por %p167, %p168
      %p170 = scmp.ne.s32.totalorder %s162, %s164
      %p171 = scmp.eq.s32.totalorder %s23, 1
      %p172 = por %p170, %p171
      %p173 = scmp.ne.s32.totalorder %s164, %s165
      %p174 = scmp.eq.s32.totalorder %s23, 0
      %p175 = por %p173, %p174
      %p176 = scmp.ne.s32.totalorder %s164, %s165
      %p177 = scmp.eq.s32.totalorder %s24, 1
      %p178 = por %p176, %p177
      %p180 = scmp.ne.s32.totalorder %s165, %s179
      %p181 = scmp.eq.s32.totalorder %s24, 0
      %p182 = por %p180, %p181
      %s184 = sadd.s32 %s183, 1
      %p187 = scmp.eq.s32.totalorder %s18, 1
      %p188 = scmp.ne.s32.totalorder %s183, %s185
      %p189 = scmp.eq.s32.totalorder %s18, 0
      %p190 = por %p188, %p189
      %p191 = scmp.ne.s32.totalorder %s183, %s185
      %p192 = scmp.eq.s32.totalorder %s23, 1
      %p193 = por %p191, %p192
      %p194 = scmp.ne.s32.totalorder %s185, %s186
      %p195 = scmp.eq.s32.totalorder %s23, 0
      %p196 = por %p194, %p195
      %p197 = scmp.ne.s32.totalorder %s185, %s186
      %p198 = scmp.eq.s32.totalorder %s24, 1
      %p199 = por %p197, %p198
      %p201 = scmp.ne.s32.totalorder %s186, %s200
      %p202 = scmp.eq.s32.totalorder %s24, 0
      %p203 = por %p201, %p202
      %s204 = ssub.s32 %s18, %s25
      %p205 = scmp.eq.s32.totalorder %s204, 0
      %s207 = sadd.s32 %s206, 1
      %s208 = scalar_select %p205, %s206, %s207
      %p211 = pneg %p205
      %p212 = scmp.eq.s32.totalorder %s18, 1
      %p213 = por %p211, %p212
      %p214 = scmp.ne.s32.totalorder %s206, %s209
      %p215 = scmp.eq.s32.totalorder %s18, 0
      %p216 = por %p214, %p215
      %p217 = scmp.ne.s32.totalorder %s206, %s209
      %p218 = scmp.eq.s32.totalorder %s23, 1
      %p219 = por %p217, %p218
      %p220 = scmp.ne.s32.totalorder %s209, %s210
      %p221 = scmp.eq.s32.totalorder %s23, 0
      %p222 = por %p220, %p221
      %p223 = scmp.ne.s32.totalorder %s209, %s210
      %p224 = scmp.eq.s32.totalorder %s24, 1
      %p225 = por %p223, %p224
      %p227 = scmp.ne.s32.totalorder %s210, %s226
      %p228 = scmp.eq.s32.totalorder %s24, 0
      %p229 = por %p227, %p228
      %p230 = scmp.le.s32.totalorder 1, %s18
      %p231 = scmp.lt.s32.totalorder %s18, 3
      %p232 = pnand %p230, %p231
      %p233 = pneg %p232
      // Predicated region
      $region9: #{tpu_custom_call.1} parent=5 // pred_check
        _
      $region10: #{tpu_custom_call.1} parent=5 // pred_check_branch
        %235 = sbr.rel (%p232) target = $region12
      $region11: #{tpu_custom_call.1} parent=5 // pred_region
        %s236 = ssub.s32 %s18, 1
        // Predicated region
        $region13: #{tpu_custom_call.1} parent=11 // pred_check
          %p237 = pneg %p91
        $region14: #{tpu_custom_call.1} parent=11 // pred_check_branch
          %239 = sbr.rel (%p237) target = $region16
        $region15: #{tpu_custom_call.1} parent=11 // pred_region
          %s241 = ssub.s32 128, 128
          %242 = vsyncadd [#allocation3], %s241
          %s244 = sshll.u32 [#allocation2], 4
          %s245 = int_to_ptr.vmem [resolvable:$true] %s244
          %247 = dma.hbm_to_vmem [thread:$0]  %s2, 128, %s245, [#allocation3]
        $region16: #{tpu_custom_call.1} parent=11 // pred_fallthru
          _
        // Predicated region
        $region17: #{tpu_custom_call.1} parent=11 // pred_check
          %p248 = pneg %p112
        $region18: #{tpu_custom_call.1} parent=11 // pred_check_branch
          %250 = sbr.rel (%p248) target = $region20
        $region19: #{tpu_custom_call.1} parent=11 // pred_region
          _
        $region20: #{tpu_custom_call.1} parent=11 // pred_fallthru
          _
        // Predicated region
        $region21: #{tpu_custom_call.1} parent=11 // pred_check
          %p251 = pneg %p133
        $region22: #{tpu_custom_call.1} parent=11 // pred_check_branch
          %253 = sbr.rel (%p251) target = $region24
        $region23: #{tpu_custom_call.1} parent=11 // pred_region
          _
        $region24: #{tpu_custom_call.1} parent=11 // pred_fallthru
          _
        // Predicated region
        $region25: #{tpu_custom_call.1} parent=11 // pred_check
          %p254 = pneg %p154
        $region26: #{tpu_custom_call.1} parent=11 // pred_check_branch
          %256 = sbr.rel (%p254) target = $region28
        $region27: #{tpu_custom_call.1} parent=11 // pred_region
          _
        $region28: #{tpu_custom_call.1} parent=11 // pred_fallthru
          _
        // Predicated region
        $region29: #{tpu_custom_call.1} parent=11 // pred_check
          %p257 = pneg %p175
        $region30: #{tpu_custom_call.1} parent=11 // pred_check_branch
          %259 = sbr.rel (%p257) target = $region32
        $region31: #{tpu_custom_call.1} parent=11 // pred_region
          _
        $region32: #{tpu_custom_call.1} parent=11 // pred_fallthru
          _
        // Predicated region
        $region33: #{tpu_custom_call.1} parent=11 // pred_check
          %p260 = pneg %p196
        $region34: #{tpu_custom_call.1} parent=11 // pred_check_branch
          %262 = sbr.rel (%p260) target = $region36
        $region35: #{tpu_custom_call.1} parent=11 // pred_region
          _
        $region36: #{tpu_custom_call.1} parent=11 // pred_fallthru
          _
      $region12: #{tpu_custom_call.1} parent=5 // pred_fallthru
        _
      %p263 = scmp.lt.s32.totalorder %s18, 2
      // Predicated region
      $region37: #{tpu_custom_call.1} parent=5 // pred_check
        %p264 = pneg %p263
      $region38: #{tpu_custom_call.1} parent=5 // pred_check_branch
        %266 = sbr.rel (%p264) target = $region40
      $region39: #{tpu_custom_call.1} parent=5 // pred_region
        // Predicated region
        $region41: #{tpu_custom_call.1} parent=39 // pred_check
          %p267 = pneg %p38
        $region42: #{tpu_custom_call.1} parent=39 // pred_check_branch
          %269 = sbr.rel (%p267) target = $region44
        $region43: #{tpu_custom_call.1} parent=39 // pred_region
          %p270 = scmp.lt.s32.totalorder %s18, 1
          %s271 = scalar_select %p270, %s18, 1
          %s272 = smul.addr %s271, 8
          %s273 = scalar_lea.vmem %s0, %s272
        $region44: #{tpu_custom_call.1} parent=39 // pred_fallthru
          _
        // Predicated region
        $region45: #{tpu_custom_call.1} parent=39 // pred_check
          %p274 = pneg %p64
        $region46: #{tpu_custom_call.1} parent=39 // pred_check_branch
          %276 = sbr.rel (%p274) target = $region48
        $region47: #{tpu_custom_call.1} parent=39 // pred_region
          %p277 = scmp.lt.s32.totalorder %s18, 1
          %s278 = scalar_select %p277, %s18, 1
          %s279 = smul.addr %s278, 4
          %s280 = smul.addr %s279, 8
          %s281 = scalar_lea.vmem %s1, %s280
        $region48: #{tpu_custom_call.1} parent=39 // pred_fallthru
          _
      $region40: #{tpu_custom_call.1} parent=5 // pred_fallthru
        _
      %p282 = scmp.le.s32.totalorder 1, %s18
      %p283 = scmp.lt.s32.totalorder %s18, 3
      %p284 = pnand %p282, %p283
      %p285 = pneg %p284
      // Predicated region
      $region49: #{tpu_custom_call.1} parent=5 // pred_check
        _
      $region50: #{tpu_custom_call.1} parent=5 // pred_check_branch
        %287 = sbr.rel (%p284) target = $region52
      $region51: #{tpu_custom_call.1} parent=5 // pred_region
        %s288 = ssub.s32 %s18, 1
        // Predicated region
        $region53: #{tpu_custom_call.1} parent=51 // pred_check
          %p289 = pneg %p91
        $region54: #{tpu_custom_call.1} parent=51 // pred_check_branch
          %291 = sbr.rel (%p289) target = $region56
        $region55: #{tpu_custom_call.1} parent=51 // pred_region
          %292 = dma.done [#allocation3], 128
        $region56: #{tpu_custom_call.1} parent=51 // pred_fallthru
          _
        %p293 = scmp.lt.s32.totalorder %s23, 1
        %s294 = scalar_select %p293, %s23, 1
        %s295 = smul.addr %s294, 8
        %s296 = scalar_lea.vmem %s0, %s295
        %p297 = pneg %p44
        %p298 = pneg %p41
        %p299 = scmp.lt.s32.totalorder %s23, 1
        %s300 = scalar_select %p299, %s23, 1
        %s301 = smul.addr %s300, 4
        %s302 = smul.addr %s301, 8
        %s303 = scalar_lea.vmem %s1, %s302
        %p304 = pneg %p70
        %p305 = pneg %p67
        %p306 = pneg %p91
        %p307 = pneg %p88
        %p308 = pneg %p112
        %p309 = pneg %p109
        %p310 = pneg %p133
        %p311 = pneg %p130
        %p312 = pneg %p154
        %p313 = pneg %p151
        %p314 = pneg %p175
        %p315 = pneg %p172
        %p316 = pneg %p196
        %p317 = pneg %p193
        %p318 = pneg %p222
        %p319 = pneg %p219
        %s320 = sand.u32 %s209, 1
        %s321 = scalar_lea.sflag [#allocation4], %s320
        %s322 = sand.u32 %s209, 1
        %s323 = smul.addr %s322, 8
        %s324 = scalar_lea.vmem [#allocation5], %s323
        %p325 = scmp.lt.s32.totalorder %s23, 1
        %s326 = scalar_select %p325, %s23, 1
        %s327 = smul.addr %s326, 8
        %s328 = scalar_lea.vmem %s0, %s327
        %p329 = scmp.lt.s32.totalorder %s23, 1
        %s330 = scalar_select %p329, %s23, 1
        %s331 = smul.addr %s330, 4
        %s332 = smul.addr %s331, 8
        %s333 = scalar_lea.vmem %s1, %s332
        %v335 = vld [vmem:[%s328] sm:$0xff]
        %v336 = vld [vmem:[%s333] sm:$0xff]
        %v337 = vld [vmem:[%s333 + $0x8] sm:$0xff]
        %v338 = vld [vmem:[%s333 + $0x10] sm:$0xff]
        %v339 = vld [vmem:[%s333 + $0x18] sm:$0xff]
        %v340 = vld [vmem:[#allocation2] sm:$0x3f]
        %vm341 = vcmask 261120
        %v342 = vsel %vm341, %v335, 0.0
        %343 = vadd.xlane.f32.xlu0 %v342
        %v344 = vpop.xlane.xlu0 %343
        %v345 = vrcp.pop 32.0
        %v346 = vmul.f32 %v344, %v345
        %v347 = vsub.f32 %v335, %v346
        %v348 = vmul.f32 %v347, %v347
        %v349 = vsel %vm341, %v348, 0.0
        %350 = vadd.xlane.f32.xlu0 %v349
        %v351 = vpop.xlane.xlu0 %350
        %v352 = vmul.f32 %v351, %v345
        %v353 = vadd.f32 %v352, 1e-05
        %v354 = vrsqrt.pop %v353
        %v355 = vmul.f32 %v347, %v354
        %v356 = vlaneseq
        %v357 = vshrl.u32 %v356, 7
        %v358 = vsub.s32 0, %v357
        %v359 = vrot.slane %v340, %v358
        %v360 = vmul.f32 %v355, %v359
        %v361 = vlaneseq
        %v362 = vshrl.u32 %v361, 7
        %v363 = vsub.s32 1, %v362
        %v364 = vrot.slane %v340, %v363
        %v365 = vadd.f32 %v360, %v364
        %v366 = vpack.c.bf16 %v365, %v365
        %v367 = vld [vmem:[%s3] sm:$0xf]
        %v368 = vld [vmem:[%s3 + $0x4] sm:$0xf]
        %v369 = vld [vmem:[%s3 + $0x8] sm:$0xf]
        %v370 = vld [vmem:[%s3 + $0xc] sm:$0xf]
        %v371 = vld [vmem:[%s3 + $0x10] sm:$0xf]
        %v372 = vld [vmem:[%s3 + $0x14] sm:$0xf]
        %v373 = vld [vmem:[%s3 + $0x18] sm:$0xf]
        %v374 = vld [vmem:[%s3 + $0x1c] sm:$0xf]
        %v375 = vld [vmem:[%s3 + $0x20] sm:$0xf]
        %v376 = vld [vmem:[%s3 + $0x24] sm:$0xf]
        %v377 = vld [vmem:[%s3 + $0x28] sm:$0xf]
        %v378 = vld [vmem:[%s3 + $0x2c] sm:$0xf]
        %v382 = vunpack.c.l.b16 %v367
        %v383 = vunpack.c.l.b16 %v368
        %v384 = vunpack.c.l.b16 %v369
        %v385 = vpack.c.b16 %v383, %v382
        %v386 = vpack.c.b16 %v384, %v384
        %v388 = vsel %vm341, %v366, 0
        %v391 = vsel %vm341, %v385, 0
        %v394 = vsel %vm341, %v386, 0
        %396 = vmatprep.subr.bf16.mxu0 0
        %397 = vmatpush1.bf16.xpose.msra.mxu0 %v391
        %398 = vmatprep.subr.bf16.mxu0 0
        %399 = vmatpush1.bf16.xpose.msra.mxu0 %v394
        %400 = vmatprep.subr.bf16.mxu0 0
        %401 = vmatpush1.bf16.xpose.msra.mxu0 0
        %402 = vmatprep.subr.bf16.mxu0 0
        %403 = vmatpush1.bf16.xpose.msra.mxu0 0
        %404 = vmatprep.subr.bf16.mxu0 0
        %405 = vmatpush1.bf16.xpose.msra.mxu0 0
        %406 = vmatprep.subr.bf16.mxu0 0
        %407 = vmatpush1.bf16.xpose.msra.mxu0 0
        %408 = vmatprep.subr.bf16.mxu0 0
        %409 = vmatpush1.bf16.xpose.msra.mxu0 0
        %410 = vmatprep.subr.bf16.mxu0 0
        %411 = vmatpush1.bf16.xpose.msra.mxu0 0
        %412 = vmatprep.subr.bf16.mxu0 0
        %413 = vmatpush1.bf16.xpose.msra.mxu0 0
        %414 = vmatprep.subr.bf16.mxu0 0
        %415 = vmatpush1.bf16.xpose.msra.mxu0 0
        %416 = vmatprep.subr.bf16.mxu0 0
        %417 = vmatpush1.bf16.xpose.msra.mxu0 0
        %418 = vmatprep.subr.bf16.mxu0 0
        %419 = vmatpush1.bf16.xpose.msra.mxu0 0
        %420 = vmatprep.subr.bf16.mxu0 0
        %421 = vmatpush1.bf16.xpose.msra.mxu0 0
        %422 = vmatprep.subr.bf16.mxu0 0
        %423 = vmatpush1.bf16.xpose.msra.mxu0 0
        %424 = vmatprep.subr.bf16.mxu0 0
        %425 = vmatpush1.bf16.xpose.msra.mxu0 0
        %426 = vmatprep.subr.bf16.mxu0 0
        %427 = vmatpush1.bf16.xpose.msra.mxu0 0
        %428 = vmatprep.mubr.bf16.mxu0 0
        %429 = vmatmul.mubr.bf16.gmra.mrb[0].mxu0 %v388
        %v430 = vpop.f32.mrb[0].mxu0
        %v431 = vadd.f32 0.0, %v430
        %v432 = vpop.f32.mrb[0].mxu0
        %v433 = vpop.f32.mrb[0].mxu0
        %v434 = vpop.f32.mrb[0].mxu0
        %435 = vdwg.mxu0
        %v439 = vunpack.c.l.b16 %v370
        %v440 = vunpack.c.l.b16 %v371
        %v441 = vunpack.c.l.b16 %v372
        %v442 = vpack.c.b16 %v440, %v439
        %v443 = vpack.c.b16 %v441, %v441
        %v445 = vsel %vm341, %v442, 0
        %v448 = vsel %vm341, %v443, 0
        %450 = vmatprep.subr.bf16.mxu0 0
        %451 = vmatpush1.bf16.xpose.msra.mxu0 %v445
        %452 = vmatprep.subr.bf16.mxu0 0
        %453 = vmatpush1.bf16.xpose.msra.mxu0 %v448
        %454 = vmatprep.subr.bf16.mxu0 0
        %455 = vmatpush1.bf16.xpose.msra.mxu0 0
        %456 = vmatprep.subr.bf16.mxu0 0
        %457 = vmatpush1.bf16.xpose.msra.mxu0 0
        %458 = vmatprep.subr.bf16.mxu0 0
        %459 = vmatpush1.bf16.xpose.msra.mxu0 0
        %460 = vmatprep.subr.bf16.mxu0 0
        %461 = vmatpush1.bf16.xpose.msra.mxu0 0
        %462 = vmatprep.subr.bf16.mxu0 0
        %463 = vmatpush1.bf16.xpose.msra.mxu0 0
        %464 = vmatprep.subr.bf16.mxu0 0
        %465 = vmatpush1.bf16.xpose.msra.mxu0 0
        %466 = vmatprep.subr.bf16.mxu0 0
        %467 = vmatpush1.bf16.xpose.msra.mxu0 0
        %468 = vmatprep.subr.bf16.mxu0 0
        %469 = vmatpush1.bf16.xpose.msra.mxu0 0
        %470 = vmatprep.subr.bf16.mxu0 0
        %471 = vmatpush1.bf16.xpose.msra.mxu0 0
        %472 = vmatprep.subr.bf16.mxu0 0
        %473 = vmatpush1.bf16.xpose.msra.mxu0 0
        %474 = vmatprep.subr.bf16.mxu0 0
        %475 = vmatpush1.bf16.xpose.msra.mxu0 0
        %476 = vmatprep.subr.bf16.mxu0 0
        %477 = vmatpush1.bf16.xpose.msra.mxu0 0
        %478 = vmatprep.subr.bf16.mxu0 0
        %479 = vmatpush1.bf16.xpose.msra.mxu0 0
        %480 = vmatprep.subr.bf16.mxu0 0
        %481 = vmatpush1.bf16.xpose.msra.mxu0 0
        %482 = vmatprep.mubr.bf16.mxu0 0
        %483 = vmatmul.mubr.bf16.gmra.mrb[0].mxu0 %v388
        %v484 = vpop.f32.mrb[0].mxu0
        %v485 = vadd.f32 0.0, %v484
        %v486 = vpop.f32.mrb[0].mxu0
        %v487 = vpop.f32.mrb[0].mxu0
        %v488 = vpop.f32.mrb[0].mxu0
        %489 = vdwg.mxu0
        %v493 = vunpack.c.l.b16 %v373
        %v494 = vunpack.c.l.b16 %v374
        %v495 = vunpack.c.l.b16 %v375
        %v496 = vpack.c.b16 %v494, %v493
        %v497 = vpack.c.b16 %v495, %v495
        %v499 = vsel %vm341, %v496, 0
        %v502 = vsel %vm341, %v497, 0
        %504 = vmatprep.subr.bf16.mxu0 0
        %505 = vmatpush1.bf16.xpose.msra.mxu0 %v499
        %506 = vmatprep.subr.bf16.mxu0 0
        %507 = vmatpush1.bf16.xpose.msra.mxu0 %v502
        %508 = vmatprep.subr.bf16.mxu0 0
        %509 = vmatpush1.bf16.xpose.msra.mxu0 0
        %510 = vmatprep.subr.bf16.mxu0 0
        %511 = vmatpush1.bf16.xpose.msra.mxu0 0
        %512 = vmatprep.subr.bf16.mxu0 0
        %513 = vmatpush1.bf16.xpose.msra.mxu0 0
        %514 = vmatprep.subr.bf16.mxu0 0
        %515 = vmatpush1.bf16.xpose.msra.mxu0 0
        %516 = vmatprep.subr.bf16.mxu0 0
        %517 = vmatpush1.bf16.xpose.msra.mxu0 0
        %518 = vmatprep.subr.bf16.mxu0 0
        %519 = vmatpush1.bf16.xpose.msra.mxu0 0
        %520 = vmatprep.subr.bf16.mxu0 0
        %521 = vmatpush1.bf16.xpose.msra.mxu0 0
        %522 = vmatprep.subr.bf16.mxu0 0
        %523 = vmatpush1.bf16.xpose.msra.mxu0 0
        %524 = vmatprep.subr.bf16.mxu0 0
        %525 = vmatpush1.bf16.xpose.msra.mxu0 0
        %526 = vmatprep.subr.bf16.mxu0 0
        %527 = vmatpush1.bf16.xpose.msra.mxu0 0
        %528 = vmatprep.subr.bf16.mxu0 0
        %529 = vmatpush1.bf16.xpose.msra.mxu0 0
        %530 = vmatprep.subr.bf16.mxu0 0
        %531 = vmatpush1.bf16.xpose.msra.mxu0 0
        %532 = vmatprep.subr.bf16.mxu0 0
        %533 = vmatpush1.bf16.xpose.msra.mxu0 0
        %534 = vmatprep.subr.bf16.mxu0 0
        %535 = vmatpush1.bf16.xpose.msra.mxu0 0
        %536 = vmatprep.mubr.bf16.mxu0 0
        %537 = vmatmul.mubr.bf16.gmra.mrb[0].mxu0 %v388
        %v538 = vpop.f32.mrb[0].mxu0
        %v539 = vadd.f32 0.0, %v538
        %v540 = vpop.f32.mrb[0].mxu0
        %v541 = vpop.f32.mrb[0].mxu0
        %v542 = vpop.f32.mrb[0].mxu0
        %543 = vdwg.mxu0
        %v547 = vunpack.c.l.b16 %v376
        %v548 = vunpack.c.l.b16 %v377
        %v549 = vunpack.c.l.b16 %v378
        %v550 = vpack.c.b16 %v548, %v547
        %v551 = vpack.c.b16 %v549, %v549
        %v553 = vsel %vm341, %v550, 0
        %v556 = vsel %vm341, %v551, 0
        %558 = vmatprep.subr.bf16.mxu0 0
        %559 = vmatpush1.bf16.xpose.msra.mxu0 %v553
        %560 = vmatprep.subr.bf16.mxu0 0
        %561 = vmatpush1.bf16.xpose.msra.mxu0 %v556
        %562 = vmatprep.subr.bf16.mxu0 0
        %563 = vmatpush1.bf16.xpose.msra.mxu0 0
        %564 = vmatprep.subr.bf16.mxu0 0
        %565 = vmatpush1.bf16.xpose.msra.mxu0 0
        %566 = vmatprep.subr.bf16.mxu0 0
        %567 = vmatpush1.bf16.xpose.msra.mxu0 0
        %568 = vmatprep.subr.bf16.mxu0 0
        %569 = vmatpush1.bf16.xpose.msra.mxu0 0
        %570 = vmatprep.subr.bf16.mxu0 0
        %571 = vmatpush1.bf16.xpose.msra.mxu0 0
        %572 = vmatprep.subr.bf16.mxu0 0
        %573 = vmatpush1.bf16.xpose.msra.mxu0 0
        %574 = vmatprep.subr.bf16.mxu0 0
        %575 = vmatpush1.bf16.xpose.msra.mxu0 0
        %576 = vmatprep.subr.bf16.mxu0 0
        %577 = vmatpush1.bf16.xpose.msra.mxu0 0
        %578 = vmatprep.subr.bf16.mxu0 0
        %579 = vmatpush1.bf16.xpose.msra.mxu0 0
        %580 = vmatprep.subr.bf16.mxu0 0
        %581 = vmatpush1.bf16.xpose.msra.mxu0 0
        %582 = vmatprep.subr.bf16.mxu0 0
        %583 = vmatpush1.bf16.xpose.msra.mxu0 0
        %584 = vmatprep.subr.bf16.mxu0 0
        %585 = vmatpush1.bf16.xpose.msra.mxu0 0
        %586 = vmatprep.subr.bf16.mxu0 0
        %587 = vmatpush1.bf16.xpose.msra.mxu0 0
        %588 = vmatprep.subr.bf16.mxu0 0
        %589 = vmatpush1.bf16.xpose.msra.mxu0 0
        %590 = vmatprep.mubr.bf16.mxu0 0
        %591 = vmatmul.mubr.bf16.gmra.mrb[0].mxu0 %v388
        %v592 = vpop.f32.mrb[0].mxu0
        %v593 = vadd.f32 0.0, %v592
        %v594 = vpop.f32.mrb[0].mxu0
        %v595 = vpop.f32.mrb[0].mxu0
        %v596 = vpop.f32.mrb[0].mxu0
        %597 = vdwg.mxu0
        %599 = vrot.lane.b32.xlu0 %v431, 120
        %v600 = vpop.permute.xlu0 %599
        %vm601 = vcmask 64512
        %v602 = vsel %vm601, %v431, 0
        %v604 = vsel %vm601, %v600, 0
        %606 = vmatprep.subr.mxu0 0.0
        %607 = vmatpush1.xpose.msra.mxu0 %v604
        %608 = vmatprep.subr.mxu0 0.0
        %609 = vmatpush1.xpose.msra.mxu0 0.0
        %610 = vmatprep.subr.mxu0 0.0
        %611 = vmatpush1.xpose.msra.mxu0 0.0
        %612 = vmatprep.subr.mxu0 0.0
        %613 = vmatpush1.xpose.msra.mxu0 0.0
        %614 = vmatprep.subr.mxu0 0.0
        %615 = vmatpush1.xpose.msra.mxu0 0.0
        %616 = vmatprep.subr.mxu0 0.0
        %617 = vmatpush1.xpose.msra.mxu0 0.0
        %618 = vmatprep.subr.mxu0 0.0
        %619 = vmatpush1.xpose.msra.mxu0 0.0
        %620 = vmatprep.subr.mxu0 0.0
        %621 = vmatpush1.xpose.msra.mxu0 0.0
        %622 = vmatprep.subr.mxu0 0.0
        %623 = vmatpush1.xpose.msra.mxu0 0.0
        %624 = vmatprep.subr.mxu0 0.0
        %625 = vmatpush1.xpose.msra.mxu0 0.0
        %626 = vmatprep.subr.mxu0 0.0
        %627 = vmatpush1.xpose.msra.mxu0 0.0
        %628 = vmatprep.subr.mxu0 0.0
        %629 = vmatpush1.xpose.msra.mxu0 0.0
        %630 = vmatprep.subr.mxu0 0.0
        %631 = vmatpush1.xpose.msra.mxu0 0.0
        %632 = vmatprep.subr.mxu0 0.0
        %633 = vmatpush1.xpose.msra.mxu0 0.0
        %634 = vmatprep.subr.mxu0 0.0
        %635 = vmatpush1.xpose.msra.mxu0 0.0
        %636 = vmatprep.subr.mxu0 0.0
        %637 = vmatpush1.xpose.msra.mxu0 0.0
        %638 = vmatprep.subr.mxu0 0.0
        %639 = vmatpush1.xpose.msra.mxu0 0.0
        %640 = vmatprep.subr.mxu0 0.0
        %641 = vmatpush1.xpose.msra.mxu0 0.0
        %642 = vmatprep.subr.mxu0 0.0
        %643 = vmatpush1.xpose.msra.mxu0 0.0
        %644 = vmatprep.subr.mxu0 0.0
        %645 = vmatpush1.xpose.msra.mxu0 0.0
        %646 = vmatprep.subr.mxu0 0.0
        %647 = vmatpush1.xpose.msra.mxu0 0.0
        %648 = vmatprep.subr.mxu0 0.0
        %649 = vmatpush1.xpose.msra.mxu0 0.0
        %650 = vmatprep.subr.mxu0 0.0
        %651 = vmatpush1.xpose.msra.mxu0 0.0
        %652 = vmatprep.subr.mxu0 0.0
        %653 = vmatpush1.xpose.msra.mxu0 0.0
        %654 = vmatprep.subr.mxu0 0.0
        %655 = vmatpush1.xpose.msra.mxu0 0.0
        %656 = vmatprep.subr.mxu0 0.0
        %657 = vmatpush1.xpose.msra.mxu0 0.0
        %658 = vmatprep.subr.mxu0 0.0
        %659 = vmatpush1.xpose.msra.mxu0 0.0
        %660 = vmatprep.subr.mxu0 0.0
        %661 = vmatpush1.xpose.msra.mxu0 0.0
        %662 = vmatprep.subr.mxu0 0.0
        %663 = vmatpush1.xpose.msra.mxu0 0.0
        %664 = vmatprep.subr.mxu0 0.0
        %665 = vmatpush1.xpose.msra.mxu0 0.0
        %666 = vmatprep.subr.mxu0 0.0
        %667 = vmatpush1.xpose.msra.mxu0 0.0
        %668 = vmatprep.subr.mxu0 0.0
        %669 = vmatpush1.xpose.msra.mxu0 0.0
        %670 = vmatprep.mubr.f32.mxu0 0.0
        %671 = vmatmul.mubr.f32.gmra.mrb[0].mxu0 %v602
        %v672 = vpop.f32.mrb[0].mxu0
        %v673 = vadd.f32 %v336, %v672
        %v674 = vpop.f32.mrb[0].mxu0
        %675 = vdwg.mxu0
        %677 = vrot.lane.b32.xlu0 %v485, 120
        %v678 = vpop.permute.xlu0 %677
        %v679 = vsel %vm601, %v485, 0
        %v681 = vsel %vm601, %v678, 0
        %683 = vmatprep.subr.mxu0 0.0
        %684 = vmatpush1.xpose.msra.mxu0 %v681
        %685 = vmatprep.subr.mxu0 0.0
        %686 = vmatpush1.xpose.msra.mxu0 0.0
        %687 = vmatprep.subr.mxu0 0.0
        %688 = vmatpush1.xpose.msra.mxu0 0.0
        %689 = vmatprep.subr.mxu0 0.0
        %690 = vmatpush1.xpose.msra.mxu0 0.0
        %691 = vmatprep.subr.mxu0 0.0
        %692 = vmatpush1.xpose.msra.mxu0 0.0
        %693 = vmatprep.subr.mxu0 0.0
        %694 = vmatpush1.xpose.msra.mxu0 0.0
        %695 = vmatprep.subr.mxu0 0.0
        %696 = vmatpush1.xpose.msra.mxu0 0.0
        %697 = vmatprep.subr.mxu0 0.0
        %698 = vmatpush1.xpose.msra.mxu0 0.0
        %699 = vmatprep.subr.mxu0 0.0
        %700 = vmatpush1.xpose.msra.mxu0 0.0
        %701 = vmatprep.subr.mxu0 0.0
        %702 = vmatpush1.xpose.msra.mxu0 0.0
        %703 = vmatprep.subr.mxu0 0.0
        %704 = vmatpush1.xpose.msra.mxu0 0.0
        %705 = vmatprep.subr.mxu0 0.0
        %706 = vmatpush1.xpose.msra.mxu0 0.0
        %707 = vmatprep.subr.mxu0 0.0
        %708 = vmatpush1.xpose.msra.mxu0 0.0
        %709 = vmatprep.subr.mxu0 0.0
        %710 = vmatpush1.xpose.msra.mxu0 0.0
        %711 = vmatprep.subr.mxu0 0.0
        %712 = vmatpush1.xpose.msra.mxu0 0.0
        %713 = vmatprep.subr.mxu0 0.0
        %714 = vmatpush1.xpose.msra.mxu0 0.0
        %715 = vmatprep.subr.mxu0 0.0
        %716 = vmatpush1.xpose.msra.mxu0 0.0
        %717 = vmatprep.subr.mxu0 0.0
        %718 = vmatpush1.xpose.msra.mxu0 0.0
        %719 = vmatprep.subr.mxu0 0.0
        %720 = vmatpush1.xpose.msra.mxu0 0.0
        %721 = vmatprep.subr.mxu0 0.0
        %722 = vmatpush1.xpose.msra.mxu0 0.0
        %723 = vmatprep.subr.mxu0 0.0
        %724 = vmatpush1.xpose.msra.mxu0 0.0
        %725 = vmatprep.subr.mxu0 0.0
        %726 = vmatpush1.xpose.msra.mxu0 0.0
        %727 = vmatprep.subr.mxu0 0.0
        %728 = vmatpush1.xpose.msra.mxu0 0.0
        %729 = vmatprep.subr.mxu0 0.0
        %730 = vmatpush1.xpose.msra.mxu0 0.0
        %731 = vmatprep.subr.mxu0 0.0
        %732 = vmatpush1.xpose.msra.mxu0 0.0
        %733 = vmatprep.subr.mxu0 0.0
        %734 = vmatpush1.xpose.msra.mxu0 0.0
        %735 = vmatprep.subr.mxu0 0.0
        %736 = vmatpush1.xpose.msra.mxu0 0.0
        %737 = vmatprep.subr.mxu0 0.0
        %738 = vmatpush1.xpose.msra.mxu0 0.0
        %739 = vmatprep.subr.mxu0 0.0
        %740 = vmatpush1.xpose.msra.mxu0 0.0
        %741 = vmatprep.subr.mxu0 0.0
        %742 = vmatpush1.xpose.msra.mxu0 0.0
        %743 = vmatprep.subr.mxu0 0.0
        %744 = vmatpush1.xpose.msra.mxu0 0.0
        %745 = vmatprep.subr.mxu0 0.0
        %746 = vmatpush1.xpose.msra.mxu0 0.0
        %747 = vmatprep.mubr.f32.mxu0 0.0
        %748 = vmatmul.mubr.f32.gmra.mrb[0].mxu0 %v679
        %v749 = vpop.f32.mrb[0].mxu0
        %v750 = vadd.f32 %v337, %v749
        %v751 = vpop.f32.mrb[0].mxu0
        %752 = vdwg.mxu0
        %754 = vrot.lane.b32.xlu0 %v539, 120
        %v755 = vpop.permute.xlu0 %754
        %v756 = vsel %vm601, %v539, 0
        %v758 = vsel %vm601, %v755, 0
        %760 = vmatprep.subr.mxu0 0.0
        %761 = vmatpush1.xpose.msra.mxu0 %v758
        %762 = vmatprep.subr.mxu0 0.0
        %763 = vmatpush1.xpose.msra.mxu0 0.0
        %764 = vmatprep.subr.mxu0 0.0
        %765 = vmatpush1.xpose.msra.mxu0 0.0
        %766 = vmatprep.subr.mxu0 0.0
        %767 = vmatpush1.xpose.msra.mxu0 0.0
        %768 = vmatprep.subr.mxu0 0.0
        %769 = vmatpush1.xpose.msra.mxu0 0.0
        %770 = vmatprep.subr.mxu0 0.0
        %771 = vmatpush1.xpose.msra.mxu0 0.0
        %772 = vmatprep.subr.mxu0 0.0
        %773 = vmatpush1.xpose.msra.mxu0 0.0
        %774 = vmatprep.subr.mxu0 0.0
        %775 = vmatpush1.xpose.msra.mxu0 0.0
        %776 = vmatprep.subr.mxu0 0.0
        %777 = vmatpush1.xpose.msra.mxu0 0.0
        %778 = vmatprep.subr.mxu0 0.0
        %779 = vmatpush1.xpose.msra.mxu0 0.0
        %780 = vmatprep.subr.mxu0 0.0
        %781 = vmatpush1.xpose.msra.mxu0 0.0
        %782 = vmatprep.subr.mxu0 0.0
        %783 = vmatpush1.xpose.msra.mxu0 0.0
        %784 = vmatprep.subr.mxu0 0.0
        %785 = vmatpush1.xpose.msra.mxu0 0.0
        %786 = vmatprep.subr.mxu0 0.0
        %787 = vmatpush1.xpose.msra.mxu0 0.0
        %788 = vmatprep.subr.mxu0 0.0
        %789 = vmatpush1.xpose.msra.mxu0 0.0
        %790 = vmatprep.subr.mxu0 0.0
        %791 = vmatpush1.xpose.msra.mxu0 0.0
        %792 = vmatprep.subr.mxu0 0.0
        %793 = vmatpush1.xpose.msra.mxu0 0.0
        %794 = vmatprep.subr.mxu0 0.0
        %795 = vmatpush1.xpose.msra.mxu0 0.0
        %796 = vmatprep.subr.mxu0 0.0
        %797 = vmatpush1.xpose.msra.mxu0 0.0
        %798 = vmatprep.subr.mxu0 0.0
        %799 = vmatpush1.xpose.msra.mxu0 0.0
        %800 = vmatprep.subr.mxu0 0.0
        %801 = vmatpush1.xpose.msra.mxu0 0.0
        %802 = vmatprep.subr.mxu0 0.0
        %803 = vmatpush1.xpose.msra.mxu0 0.0
        %804 = vmatprep.subr.mxu0 0.0
        %805 = vmatpush1.xpose.msra.mxu0 0.0
        %806 = vmatprep.subr.mxu0 0.0
        %807 = vmatpush1.xpose.msra.mxu0 0.0
        %808 = vmatprep.subr.mxu0 0.0
        %809 = vmatpush1.xpose.msra.mxu0 0.0
        %810 = vmatprep.subr.mxu0 0.0
        %811 = vmatpush1.xpose.msra.mxu0 0.0
        %812 = vmatprep.subr.mxu0 0.0
        %813 = vmatpush1.xpose.msra.mxu0 0.0
        %814 = vmatprep.subr.mxu0 0.0
        %815 = vmatpush1.xpose.msra.mxu0 0.0
        %816 = vmatprep.subr.mxu0 0.0
        %817 = vmatpush1.xpose.msra.mxu0 0.0
        %818 = vmatprep.subr.mxu0 0.0
        %819 = vmatpush1.xpose.msra.mxu0 0.0
        %820 = vmatprep.subr.mxu0 0.0
        %821 = vmatpush1.xpose.msra.mxu0 0.0
        %822 = vmatprep.subr.mxu0 0.0
        %823 = vmatpush1.xpose.msra.mxu0 0.0
        %824 = vmatprep.mubr.f32.mxu0 0.0
        %825 = vmatmul.mubr.f32.gmra.mrb[0].mxu0 %v756
        %v826 = vpop.f32.mrb[0].mxu0
        %v827 = vadd.f32 %v338, %v826
        %v828 = vpop.f32.mrb[0].mxu0
        %829 = vdwg.mxu0
        %831 = vrot.lane.b32.xlu0 %v593, 120
        %v832 = vpop.permute.xlu0 %831
        %v833 = vsel %vm601, %v593, 0
        %v835 = vsel %vm601, %v832, 0
        %837 = vmatprep.subr.mxu0 0.0
        %838 = vmatpush1.xpose.msra.mxu0 %v835
        %839 = vmatprep.subr.mxu0 0.0
        %840 = vmatpush1.xpose.msra.mxu0 0.0
        %841 = vmatprep.subr.mxu0 0.0
        %842 = vmatpush1.xpose.msra.mxu0 0.0
        %843 = vmatprep.subr.mxu0 0.0
        %844 = vmatpush1.xpose.msra.mxu0 0.0
        %845 = vmatprep.subr.mxu0 0.0
        %846 = vmatpush1.xpose.msra.mxu0 0.0
        %847 = vmatprep.subr.mxu0 0.0
        %848 = vmatpush1.xpose.msra.mxu0 0.0
        %849 = vmatprep.subr.mxu0 0.0
        %850 = vmatpush1.xpose.msra.mxu0 0.0
        %851 = vmatprep.subr.mxu0 0.0
        %852 = vmatpush1.xpose.msra.mxu0 0.0
        %853 = vmatprep.subr.mxu0 0.0
        %854 = vmatpush1.xpose.msra.mxu0 0.0
        %855 = vmatprep.subr.mxu0 0.0
        %856 = vmatpush1.xpose.msra.mxu0 0.0
        %857 = vmatprep.subr.mxu0 0.0
        %858 = vmatpush1.xpose.msra.mxu0 0.0
        %859 = vmatprep.subr.mxu0 0.0
        %860 = vmatpush1.xpose.msra.mxu0 0.0
        %861 = vmatprep.subr.mxu0 0.0
        %862 = vmatpush1.xpose.msra.mxu0 0.0
        %863 = vmatprep.subr.mxu0 0.0
        %864 = vmatpush1.xpose.msra.mxu0 0.0
        %865 = vmatprep.subr.mxu0 0.0
        %866 = vmatpush1.xpose.msra.mxu0 0.0
        %867 = vmatprep.subr.mxu0 0.0
        %868 = vmatpush1.xpose.msra.mxu0 0.0
        %869 = vmatprep.subr.mxu0 0.0
        %870 = vmatpush1.xpose.msra.mxu0 0.0
        %871 = vmatprep.subr.mxu0 0.0
        %872 = vmatpush1.xpose.msra.mxu0 0.0
        %873 = vmatprep.subr.mxu0 0.0
        %874 = vmatpush1.xpose.msra.mxu0 0.0
        %875 = vmatprep.subr.mxu0 0.0
        %876 = vmatpush1.xpose.msra.mxu0 0.0
        %877 = vmatprep.subr.mxu0 0.0
        %878 = vmatpush1.xpose.msra.mxu0 0.0
        %879 = vmatprep.subr.mxu0 0.0
        %880 = vmatpush1.xpose.msra.mxu0 0.0
        %881 = vmatprep.subr.mxu0 0.0
        %882 = vmatpush1.xpose.msra.mxu0 0.0
        %883 = vmatprep.subr.mxu0 0.0
        %884 = vmatpush1.xpose.msra.mxu0 0.0
        %885 = vmatprep.subr.mxu0 0.0
        %886 = vmatpush1.xpose.msra.mxu0 0.0
        %887 = vmatprep.subr.mxu0 0.0
        %888 = vmatpush1.xpose.msra.mxu0 0.0
        %889 = vmatprep.subr.mxu0 0.0
        %890 = vmatpush1.xpose.msra.mxu0 0.0
        %891 = vmatprep.subr.mxu0 0.0
        %892 = vmatpush1.xpose.msra.mxu0 0.0
        %893 = vmatprep.subr.mxu0 0.0
        %894 = vmatpush1.xpose.msra.mxu0 0.0
        %895 = vmatprep.subr.mxu0 0.0
        %896 = vmatpush1.xpose.msra.mxu0 0.0
        %897 = vmatprep.subr.mxu0 0.0
        %898 = vmatpush1.xpose.msra.mxu0 0.0
        %899 = vmatprep.subr.mxu0 0.0
        %900 = vmatpush1.xpose.msra.mxu0 0.0
        %901 = vmatprep.mubr.f32.mxu0 0.0
        %902 = vmatmul.mubr.f32.gmra.mrb[0].mxu0 %v833
        %v903 = vpop.f32.mrb[0].mxu0
        %v904 = vadd.f32 %v339, %v903
        %v905 = vpop.f32.mrb[0].mxu0
        %906 = vdwg.mxu0
        %v907 = vsel %vm601, %v673, -inf
        %908 = vmax.xlane.f32.xlu0 %v907
        %v909 = vpop.xlane.xlu0 %908
        %v910 = vsel %vm601, %v750, -inf
        %911 = vmax.xlane.f32.xlu0 %v910
        %v912 = vpop.xlane.xlu0 %911
        %v913 = vsel %vm601, %v827, -inf
        %914 = vmax.xlane.f32.xlu0 %v913
        %v915 = vpop.xlane.xlu0 %914
        %v916 = vsel %vm601, %v904, -inf
        %917 = vmax.xlane.f32.xlu0 %v916
        %v918 = vpop.xlane.xlu0 %917
        %v919 = vmax.f32 %v909, -1e+30
        %v920 = vmax.f32 %v912, -1e+30
        %v921 = vmax.f32 %v915, -1e+30
        %v922 = vmax.f32 %v918, -1e+30
        %v923 = vsub.f32 %v673, %v919
        %v924 = vsub.f32 %v750, %v920
        %v925 = vsub.f32 %v827, %v921
        %v926 = vsub.f32 %v904, %v922
        %v927 = vmul.f32 %v923, 1.442695
        %v928 = vpow.pop %v927
        %v929 = vmul.f32 %v924, 1.442695
        %v930 = vpow.pop %v929
        %v931 = vmul.f32 %v925, 1.442695
        %v932 = vpow.pop %v931
        %v933 = vmul.f32 %v926, 1.442695
        %v934 = vpow.pop %v933
        %v935 = vsel %vm601, %v928, 0.0
        %936 = vadd.xlane.f32.xlu0 %v935
        %v937 = vpop.xlane.xlu0 %936
        %v938 = vsel %vm601, %v930, 0.0
        %939 = vadd.xlane.f32.xlu0 %v938
        %v940 = vpop.xlane.xlu0 %939
        %v941 = vsel %vm601, %v932, 0.0
        %942 = vadd.xlane.f32.xlu0 %v941
        %v943 = vpop.xlane.xlu0 %942
        %v944 = vsel %vm601, %v934, 0.0
        %945 = vadd.xlane.f32.xlu0 %v944
        %v946 = vpop.xlane.xlu0 %945
        %v947 = vmax.f32 %v937, 1e-30
        %v948 = vmax.f32 %v940, 1e-30
        %v949 = vmax.f32 %v943, 1e-30
        %v950 = vmax.f32 %v946, 1e-30
        %v951 = vrcp.pop %v947
        %v952 = vmul.f32 %v928, %v951
        %v953 = vrcp.pop %v948
        %v954 = vmul.f32 %v930, %v953
        %v955 = vrcp.pop %v949
        %v956 = vmul.f32 %v932, %v955
        %v957 = vrcp.pop %v950
        %v958 = vmul.f32 %v934, %v957
        %959 = vrot.lane.b32.xlu0 %v431, 112
        %v960 = vpop.permute.xlu0 %959
        %v963 = vsel %vm601, %v952, 0
        %965 = vmatprep.subr.mxu0 0.0
        %966 = vmatpush1.msra.mxu0 %v960
        %967 = vmatprep.subr.mxu0 0.0
        %968 = vmatpush1.msra.mxu0 0.0
        %969 = vmatprep.subr.mxu0 0.0
        %970 = vmatpush1.msra.mxu0 0.0
        %971 = vmatprep.subr.mxu0 0.0
        %972 = vmatpush1.msra.mxu0 0.0
        %973 = vmatprep.subr.mxu0 0.0
        %974 = vmatpush1.msra.mxu0 0.0
        %975 = vmatprep.subr.mxu0 0.0
        %976 = vmatpush1.msra.mxu0 0.0
        %977 = vmatprep.subr.mxu0 0.0
        %978 = vmatpush1.msra.mxu0 0.0
        %979 = vmatprep.subr.mxu0 0.0
        %980 = vmatpush1.msra.mxu0 0.0
        %981 = vmatprep.subr.mxu0 0.0
        %982 = vmatpush1.msra.mxu0 0.0
        %983 = vmatprep.subr.mxu0 0.0
        %984 = vmatpush1.msra.mxu0 0.0
        %985 = vmatprep.subr.mxu0 0.0
        %986 = vmatpush1.msra.mxu0 0.0
        %987 = vmatprep.subr.mxu0 0.0
        %988 = vmatpush1.msra.mxu0 0.0
        %989 = vmatprep.subr.mxu0 0.0
        %990 = vmatpush1.msra.mxu0 0.0
        %991 = vmatprep.subr.mxu0 0.0
        %992 = vmatpush1.msra.mxu0 0.0
        %993 = vmatprep.subr.mxu0 0.0
        %994 = vmatpush1.msra.mxu0 0.0
        %995 = vmatprep.subr.mxu0 0.0
        %996 = vmatpush1.msra.mxu0 0.0
        %997 = vmatprep.subr.mxu0 0.0
        %998 = vmatpush1.msra.mxu0 0.0
        %999 = vmatprep.subr.mxu0 0.0
        %1000 = vmatpush1.msra.mxu0 0.0
        %1001 = vmatprep.subr.mxu0 0.0
        %1002 = vmatpush1.msra.mxu0 0.0
        %1003 = vmatprep.subr.mxu0 0.0
        %1004 = vmatpush1.msra.mxu0 0.0
        %1005 = vmatprep.subr.mxu0 0.0
        %1006 = vmatpush1.msra.mxu0 0.0
        %1007 = vmatprep.subr.mxu0 0.0
        %1008 = vmatpush1.msra.mxu0 0.0
        %1009 = vmatprep.subr.mxu0 0.0
        %1010 = vmatpush1.msra.mxu0 0.0
        %1011 = vmatprep.subr.mxu0 0.0
        %1012 = vmatpush1.msra.mxu0 0.0
        %1013 = vmatprep.subr.mxu0 0.0
        %1014 = vmatpush1.msra.mxu0 0.0
        %1015 = vmatprep.subr.mxu0 0.0
        %1016 = vmatpush1.msra.mxu0 0.0
        %1017 = vmatprep.subr.mxu0 0.0
        %1018 = vmatpush1.msra.mxu0 0.0
        %1019 = vmatprep.subr.mxu0 0.0
        %1020 = vmatpush1.msra.mxu0 0.0
        %1021 = vmatprep.subr.mxu0 0.0
        %1022 = vmatpush1.msra.mxu0 0.0
        %1023 = vmatprep.subr.mxu0 0.0
        %1024 = vmatpush1.msra.mxu0 0.0
        %1025 = vmatprep.subr.mxu0 0.0
        %1026 = vmatpush1.msra.mxu0 0.0
        %1027 = vmatprep.subr.mxu0 0.0
        %1028 = vmatpush1.msra.mxu0 0.0
        %1029 = vmatprep.mubr.f32.mxu0 0.0
        %1030 = vmatmul.mubr.f32.gmra.mrb[0].mxu0 %v963
        %v1031 = vpop.f32.mrb[0].mxu0
        %v1032 = vadd.f32 0.0, %v1031
        %v1033 = vpop.f32.mrb[0].mxu0
        %1034 = vdwg.mxu0
        %1035 = vrot.lane.b32.xlu0 %v485, 112
        %v1036 = vpop.permute.xlu0 %1035
        %v1039 = vsel %vm601, %v954, 0
        %1041 = vmatprep.subr.mxu0 0.0
        %1042 = vmatpush1.msra.mxu0 %v1036
        %1043 = vmatprep.subr.mxu0 0.0
        %1044 = vmatpush1.msra.mxu0 0.0
        %1045 = vmatprep.subr.mxu0 0.0
        %1046 = vmatpush1.msra.mxu0 0.0
        %1047 = vmatprep.subr.mxu0 0.0
        %1048 = vmatpush1.msra.mxu0 0.0
        %1049 = vmatprep.subr.mxu0 0.0
        %1050 = vmatpush1.msra.mxu0 0.0
        %1051 = vmatprep.subr.mxu0 0.0
        %1052 = vmatpush1.msra.mxu0 0.0
        %1053 = vmatprep.subr.mxu0 0.0
        %1054 = vmatpush1.msra.mxu0 0.0
        %1055 = vmatprep.subr.mxu0 0.0
        %1056 = vmatpush1.msra.mxu0 0.0
        %1057 = vmatprep.subr.mxu0 0.0
        %1058 = vmatpush1.msra.mxu0 0.0
        %1059 = vmatprep.subr.mxu0 0.0
        %1060 = vmatpush1.msra.mxu0 0.0
        %1061 = vmatprep.subr.mxu0 0.0
        %1062 = vmatpush1.msra.mxu0 0.0
        %1063 = vmatprep.subr.mxu0 0.0
        %1064 = vmatpush1.msra.mxu0 0.0
        %1065 = vmatprep.subr.mxu0 0.0
        %1066 = vmatpush1.msra.mxu0 0.0
        %1067 = vmatprep.subr.mxu0 0.0
        %1068 = vmatpush1.msra.mxu0 0.0
        %1069 = vmatprep.subr.mxu0 0.0
        %1070 = vmatpush1.msra.mxu0 0.0
        %1071 = vmatprep.subr.mxu0 0.0
        %1072 = vmatpush1.msra.mxu0 0.0
        %1073 = vmatprep.subr.mxu0 0.0
        %1074 = vmatpush1.msra.mxu0 0.0
        %1075 = vmatprep.subr.mxu0 0.0
        %1076 = vmatpush1.msra.mxu0 0.0
        %1077 = vmatprep.subr.mxu0 0.0
        %1078 = vmatpush1.msra.mxu0 0.0
        %1079 = vmatprep.subr.mxu0 0.0
        %1080 = vmatpush1.msra.mxu0 0.0
        %1081 = vmatprep.subr.mxu0 0.0
        %1082 = vmatpush1.msra.mxu0 0.0
        %1083 = vmatprep.subr.mxu0 0.0
        %1084 = vmatpush1.msra.mxu0 0.0
        %1085 = vmatprep.subr.mxu0 0.0
        %1086 = vmatpush1.msra.mxu0 0.0
        %1087 = vmatprep.subr.mxu0 0.0
        %1088 = vmatpush1.msra.mxu0 0.0
        %1089 = vmatprep.subr.mxu0 0.0
        %1090 = vmatpush1.msra.mxu0 0.0
        %1091 = vmatprep.subr.mxu0 0.0
        %1092 = vmatpush1.msra.mxu0 0.0
        %1093 = vmatprep.subr.mxu0 0.0
        %1094 = vmatpush1.msra.mxu0 0.0
        %1095 = vmatprep.subr.mxu0 0.0
        %1096 = vmatpush1.msra.mxu0 0.0
        %1097 = vmatprep.subr.mxu0 0.0
        %1098 = vmatpush1.msra.mxu0 0.0
        %1099 = vmatprep.subr.mxu0 0.0
        %1100 = vmatpush1.msra.mxu0 0.0
        %1101 = vmatprep.subr.mxu0 0.0
        %1102 = vmatpush1.msra.mxu0 0.0
        %1103 = vmatprep.subr.mxu0 0.0
        %1104 = vmatpush1.msra.mxu0 0.0
        %1105 = vmatprep.mubr.f32.mxu0 0.0
        %1106 = vmatmul.mubr.f32.gmra.mrb[0].mxu0 %v1039
        %v1107 = vpop.f32.mrb[0].mxu0
        %v1108 = vadd.f32 0.0, %v1107
        %v1109 = vpop.f32.mrb[0].mxu0
        %1110 = vdwg.mxu0
        %1111 = vrot.lane.b32.xlu0 %v539, 112
        %v1112 = vpop.permute.xlu0 %1111
        %v1115 = vsel %vm601, %v956, 0
        %1117 = vmatprep.subr.mxu0 0.0
        %1118 = vmatpush1.msra.mxu0 %v1112
        %1119 = vmatprep.subr.mxu0 0.0
        %1120 = vmatpush1.msra.mxu0 0.0
        %1121 = vmatprep.subr.mxu0 0.0
        %1122 = vmatpush1.msra.mxu0 0.0
        %1123 = vmatprep.subr.mxu0 0.0
        %1124 = vmatpush1.msra.mxu0 0.0
        %1125 = vmatprep.subr.mxu0 0.0
        %1126 = vmatpush1.msra.mxu0 0.0
        %1127 = vmatprep.subr.mxu0 0.0
        %1128 = vmatpush1.msra.mxu0 0.0
        %1129 = vmatprep.subr.mxu0 0.0
        %1130 = vmatpush1.msra.mxu0 0.0
        %1131 = vmatprep.subr.mxu0 0.0
        %1132 = vmatpush1.msra.mxu0 0.0
        %1133 = vmatprep.subr.mxu0 0.0
        %1134 = vmatpush1.msra.mxu0 0.0
        %1135 = vmatprep.subr.mxu0 0.0
        %1136 = vmatpush1.msra.mxu0 0.0
        %1137 = vmatprep.subr.mxu0 0.0
        %1138 = vmatpush1.msra.mxu0 0.0
        %1139 = vmatprep.subr.mxu0 0.0
        %1140 = vmatpush1.msra.mxu0 0.0
        %1141 = vmatprep.subr.mxu0 0.0
        %1142 = vmatpush1.msra.mxu0 0.0
        %1143 = vmatprep.subr.mxu0 0.0
        %1144 = vmatpush1.msra.mxu0 0.0
        %1145 = vmatprep.subr.mxu0 0.0
        %1146 = vmatpush1.msra.mxu0 0.0
        %1147 = vmatprep.subr.mxu0 0.0
        %1148 = vmatpush1.msra.mxu0 0.0
        %1149 = vmatprep.subr.mxu0 0.0
        %1150 = vmatpush1.msra.mxu0 0.0
        %1151 = vmatprep.subr.mxu0 0.0
        %1152 = vmatpush1.msra.mxu0 0.0
        %1153 = vmatprep.subr.mxu0 0.0
        %1154 = vmatpush1.msra.mxu0 0.0
        %1155 = vmatprep.subr.mxu0 0.0
        %1156 = vmatpush1.msra.mxu0 0.0
        %1157 = vmatprep.subr.mxu0 0.0
        %1158 = vmatpush1.msra.mxu0 0.0
        %1159 = vmatprep.subr.mxu0 0.0
        %1160 = vmatpush1.msra.mxu0 0.0
        %1161 = vmatprep.subr.mxu0 0.0
        %1162 = vmatpush1.msra.mxu0 0.0
        %1163 = vmatprep.subr.mxu0 0.0
        %1164 = vmatpush1.msra.mxu0 0.0
        %1165 = vmatprep.subr.mxu0 0.0
        %1166 = vmatpush1.msra.mxu0 0.0
        %1167 = vmatprep.subr.mxu0 0.0
        %1168 = vmatpush1.msra.mxu0 0.0
        %1169 = vmatprep.subr.mxu0 0.0
        %1170 = vmatpush1.msra.mxu0 0.0
        %1171 = vmatprep.subr.mxu0 0.0
        %1172 = vmatpush1.msra.mxu0 0.0
        %1173 = vmatprep.subr.mxu0 0.0
        %1174 = vmatpush1.msra.mxu0 0.0
        %1175 = vmatprep.subr.mxu0 0.0
        %1176 = vmatpush1.msra.mxu0 0.0
        %1177 = vmatprep.subr.mxu0 0.0
        %1178 = vmatpush1.msra.mxu0 0.0
        %1179 = vmatprep.subr.mxu0 0.0
        %1180 = vmatpush1.msra.mxu0 0.0
        %1181 = vmatprep.mubr.f32.mxu0 0.0
        %1182 = vmatmul.mubr.f32.gmra.mrb[0].mxu0 %v1115
        %v1183 = vpop.f32.mrb[0].mxu0
        %v1184 = vadd.f32 0.0, %v1183
        %v1185 = vpop.f32.mrb[0].mxu0
        %1186 = vdwg.mxu0
        %1187 = vrot.lane.b32.xlu0 %v593, 112
        %v1188 = vpop.permute.xlu0 %1187
        %v1191 = vsel %vm601, %v958, 0
        %1193 = vmatprep.subr.mxu0 0.0
        %1194 = vmatpush1.msra.mxu0 %v1188
        %1195 = vmatprep.subr.mxu0 0.0
        %1196 = vmatpush1.msra.mxu0 0.0
        %1197 = vmatprep.subr.mxu0 0.0
        %1198 = vmatpush1.msra.mxu0 0.0
        %1199 = vmatprep.subr.mxu0 0.0
        %1200 = vmatpush1.msra.mxu0 0.0
        %1201 = vmatprep.subr.mxu0 0.0
        %1202 = vmatpush1.msra.mxu0 0.0
        %1203 = vmatprep.subr.mxu0 0.0
        %1204 = vmatpush1.msra.mxu0 0.0
        %1205 = vmatprep.subr.mxu0 0.0
        %1206 = vmatpush1.msra.mxu0 0.0
        %1207 = vmatprep.subr.mxu0 0.0
        %1208 = vmatpush1.msra.mxu0 0.0
        %1209 = vmatprep.subr.mxu0 0.0
        %1210 = vmatpush1.msra.mxu0 0.0
        %1211 = vmatprep.subr.mxu0 0.0
        %1212 = vmatpush1.msra.mxu0 0.0
        %1213 = vmatprep.subr.mxu0 0.0
        %1214 = vmatpush1.msra.mxu0 0.0
        %1215 = vmatprep.subr.mxu0 0.0
        %1216 = vmatpush1.msra.mxu0 0.0
        %1217 = vmatprep.subr.mxu0 0.0
        %1218 = vmatpush1.msra.mxu0 0.0
        %1219 = vmatprep.subr.mxu0 0.0
        %1220 = vmatpush1.msra.mxu0 0.0
        %1221 = vmatprep.subr.mxu0 0.0
        %1222 = vmatpush1.msra.mxu0 0.0
        %1223 = vmatprep.subr.mxu0 0.0
        %1224 = vmatpush1.msra.mxu0 0.0
        %1225 = vmatprep.subr.mxu0 0.0
        %1226 = vmatpush1.msra.mxu0 0.0
        %1227 = vmatprep.subr.mxu0 0.0
        %1228 = vmatpush1.msra.mxu0 0.0
        %1229 = vmatprep.subr.mxu0 0.0
        %1230 = vmatpush1.msra.mxu0 0.0
        %1231 = vmatprep.subr.mxu0 0.0
        %1232 = vmatpush1.msra.mxu0 0.0
        %1233 = vmatprep.subr.mxu0 0.0
        %1234 = vmatpush1.msra.mxu0 0.0
        %1235 = vmatprep.subr.mxu0 0.0
        %1236 = vmatpush1.msra.mxu0 0.0
        %1237 = vmatprep.subr.mxu0 0.0
        %1238 = vmatpush1.msra.mxu0 0.0
        %1239 = vmatprep.subr.mxu0 0.0
        %1240 = vmatpush1.msra.mxu0 0.0
        %1241 = vmatprep.subr.mxu0 0.0
        %1242 = vmatpush1.msra.mxu0 0.0
        %1243 = vmatprep.subr.mxu0 0.0
        %1244 = vmatpush1.msra.mxu0 0.0
        %1245 = vmatprep.subr.mxu0 0.0
        %1246 = vmatpush1.msra.mxu0 0.0
        %1247 = vmatprep.subr.mxu0 0.0
        %1248 = vmatpush1.msra.mxu0 0.0
        %1249 = vmatprep.subr.mxu0 0.0
        %1250 = vmatpush1.msra.mxu0 0.0
        %1251 = vmatprep.subr.mxu0 0.0
        %1252 = vmatpush1.msra.mxu0 0.0
        %1253 = vmatprep.subr.mxu0 0.0
        %1254 = vmatpush1.msra.mxu0 0.0
        %1255 = vmatprep.subr.mxu0 0.0
        %1256 = vmatpush1.msra.mxu0 0.0
        %1257 = vmatprep.mubr.f32.mxu0 0.0
        %1258 = vmatmul.mubr.f32.gmra.mrb[0].mxu0 %v1191
        %v1259 = vpop.f32.mrb[0].mxu0
        %v1260 = vadd.f32 0.0, %v1259
        %v1261 = vpop.f32.mrb[0].mxu0
        %1262 = vdwg.mxu0
        %v1263 = vpack.c.bf16 %v1032, %v1032
        %v1264 = vpack.c.bf16 %v1108, %v1108
        %v1265 = vpack.c.bf16 %v1184, %v1184
        %v1266 = vpack.c.bf16 %v1260, %v1260
        %v1267 = vld [vmem:[%s4] sm:$0xf]
        %v1268 = vld [vmem:[%s4 + $0x4] sm:$0xf]
        %v1269 = vld [vmem:[%s4 + $0x8] sm:$0xf]
        %v1270 = vld [vmem:[%s4 + $0xc] sm:$0xf]
        %v1271 = vld [vmem:[%s4 + $0x10] sm:$0xf]
        %v1272 = vld [vmem:[%s4 + $0x14] sm:$0xf]
        %v1273 = vld [vmem:[%s4 + $0x18] sm:$0xf]
        %v1274 = vld [vmem:[%s4 + $0x1c] sm:$0xf]
        %v1275 = vld [vmem:[%s4 + $0x20] sm:$0xf]
        %v1276 = vld [vmem:[%s4 + $0x24] sm:$0xf]
        %v1277 = vld [vmem:[%s4 + $0x28] sm:$0xf]
        %v1278 = vld [vmem:[%s4 + $0x2c] sm:$0xf]
        %v1279 = vld [vmem:[%s4 + $0x30] sm:$0xf]
        %v1280 = vld [vmem:[%s4 + $0x34] sm:$0xf]
        %v1281 = vld [vmem:[%s4 + $0x38] sm:$0xf]
        %v1282 = vld [vmem:[%s4 + $0x3c] sm:$0xf]
        %v1287 = vunpack.c.l.b16 %v1267
        %v1288 = vunpack.c.l.b16 %v1268
        %v1289 = vunpack.c.l.b16 %v1269
        %v1290 = vunpack.c.l.b16 %v1270
        %v1291 = vpack.c.b16 %v1288, %v1287
        %v1292 = vpack.c.b16 %v1290, %v1289
        %v1294 = vsel %vm601, %v1263, 0
        %v1297 = vsel %vm601, %v1291, 0
        %v1300 = vsel %vm601, %v1292, 0
        %1302 = vmatprep.subr.bf16.mxu0 0
        %1303 = vmatpush1.bf16.xpose.msra.mxu0 %v1297
        %1304 = vmatprep.subr.bf16.mxu0 0
        %1305 = vmatpush1.bf16.xpose.msra.mxu0 %v1300
        %1306 = vmatprep.subr.bf16.mxu0 0
        %1307 = vmatpush1.bf16.xpose.msra.mxu0 0
        %1308 = vmatprep.subr.bf16.mxu0 0
        %1309 = vmatpush1.bf16.xpose.msra.mxu0 0
        %1310 = vmatprep.subr.bf16.mxu0 0
        %1311 = vmatpush1.bf16.xpose.msra.mxu0 0
        %1312 = vmatprep.subr.bf16.mxu0 0
        %1313 = vmatpush1.bf16.xpose.msra.mxu0 0
        %1314 = vmatprep.subr.bf16.mxu0 0
        %1315 = vmatpush1.bf16.xpose.msra.mxu0 0
        %1316 = vmatprep.subr.bf16.mxu0 0
        %1317 = vmatpush1.bf16.xpose.msra.mxu0 0
        %1318 = vmatprep.subr.bf16.mxu0 0
        %1319 = vmatpush1.bf16.xpose.msra.mxu0 0
        %1320 = vmatprep.subr.bf16.mxu0 0
        %1321 = vmatpush1.bf16.xpose.msra.mxu0 0
        %1322 = vmatprep.subr.bf16.mxu0 0
        %1323 = vmatpush1.bf16.xpose.msra.mxu0 0
        %1324 = vmatprep.subr.bf16.mxu0 0
        %1325 = vmatpush1.bf16.xpose.msra.mxu0 0
        %1326 = vmatprep.subr.bf16.mxu0 0
        %1327 = vmatpush1.bf16.xpose.msra.mxu0 0
        %1328 = vmatprep.subr.bf16.mxu0 0
        %1329 = vmatpush1.bf16.xpose.msra.mxu0 0
        %1330 = vmatprep.subr.bf16.mxu0 0
        %1331 = vmatpush1.bf16.xpose.msra.mxu0 0
        %1332 = vmatprep.subr.bf16.mxu0 0
        %1333 = vmatpush1.bf16.xpose.msra.mxu0 0
        %1334 = vmatprep.mubr.bf16.mxu0 0
        %1335 = vmatmul.mubr.bf16.gmra.mrb[0].mxu0 %v1294
        %v1336 = vpop.f32.mrb[0].mxu0
        %v1337 = vadd.f32 0.0, %v1336
        %v1338 = vpop.f32.mrb[0].mxu0
        %v1339 = vpop.f32.mrb[0].mxu0
        %v1340 = vpop.f32.mrb[0].mxu0
        %1341 = vdwg.mxu0
        %v1346 = vunpack.c.l.b16 %v1271
        %v1347 = vunpack.c.l.b16 %v1272
        %v1348 = vunpack.c.l.b16 %v1273
        %v1349 = vunpack.c.l.b16 %v1274
        %v1350 = vpack.c.b16 %v1347, %v1346
        %v1351 = vpack.c.b16 %v1349, %v1348
        %v1353 = vsel %vm601, %v1264, 0
        %v1356 = vsel %vm601, %v1350, 0
        %v1359 = vsel %vm601, %v1351, 0
        %1361 = vmatprep.subr.bf16.mxu0 0
        %1362 = vmatpush1.bf16.xpose.msra.mxu0 %v1356
        %1363 = vmatprep.subr.bf16.mxu0 0
        %1364 = vmatpush1.bf16.xpose.msra.mxu0 %v1359
        %1365 = vmatprep.subr.bf16.mxu0 0
        %1366 = vmatpush1.bf16.xpose.msra.mxu0 0
        %1367 = vmatprep.subr.bf16.mxu0 0
        %1368 = vmatpush1.bf16.xpose.msra.mxu0 0
        %1369 = vmatprep.subr.bf16.mxu0 0
        %1370 = vmatpush1.bf16.xpose.msra.mxu0 0
        %1371 = vmatprep.subr.bf16.mxu0 0
        %1372 = vmatpush1.bf16.xpose.msra.mxu0 0
        %1373 = vmatprep.subr.bf16.mxu0 0
        %1374 = vmatpush1.bf16.xpose.msra.mxu0 0
        %1375 = vmatprep.subr.bf16.mxu0 0
        %1376 = vmatpush1.bf16.xpose.msra.mxu0 0
        %1377 = vmatprep.subr.bf16.mxu0 0
        %1378 = vmatpush1.bf16.xpose.msra.mxu0 0
        %1379 = vmatprep.subr.bf16.mxu0 0
        %1380 = vmatpush1.bf16.xpose.msra.mxu0 0
        %1381 = vmatprep.subr.bf16.mxu0 0
        %1382 = vmatpush1.bf16.xpose.msra.mxu0 0
        %1383 = vmatprep.subr.bf16.mxu0 0
        %1384 = vmatpush1.bf16.xpose.msra.mxu0 0
        %1385 = vmatprep.subr.bf16.mxu0 0
        %1386 = vmatpush1.bf16.xpose.msra.mxu0 0
        %1387 = vmatprep.subr.bf16.mxu0 0
        %1388 = vmatpush1.bf16.xpose.msra.mxu0 0
        %1389 = vmatprep.subr.bf16.mxu0 0
        %1390 = vmatpush1.bf16.xpose.msra.mxu0 0
        %1391 = vmatprep.subr.bf16.mxu0 0
        %1392 = vmatpush1.bf16.xpose.msra.mxu0 0
        %1393 = vmatprep.mubr.bf16.mxu0 0
        %1394 = vmatmul.mubr.bf16.gmra.mrb[0].mxu0 %v1353
        %v1395 = vpop.f32.mrb[0].mxu0
        %v1396 = vadd.f32 0.0, %v1395
        %v1397 = vpop.f32.mrb[0].mxu0
        %v1398 = vpop.f32.mrb[0].mxu0
        %v1399 = vpop.f32.mrb[0].mxu0
        %1400 = vdwg.mxu0
        %v1405 = vunpack.c.l.b16 %v1275
        %v1406 = vunpack.c.l.b16 %v1276
        %v1407 = vunpack.c.l.b16 %v1277
        %v1408 = vunpack.c.l.b16 %v1278
        %v1409 = vpack.c.b16 %v1406, %v1405
        %v1410 = vpack.c.b16 %v1408, %v1407
        %v1412 = vsel %vm601, %v1265, 0
        %v1415 = vsel %vm601, %v1409, 0
        %v1418 = vsel %vm601, %v1410, 0
        %1420 = vmatprep.subr.bf16.mxu0 0
        %1421 = vmatpush1.bf16.xpose.msra.mxu0 %v1415
        %1422 = vmatprep.subr.bf16.mxu0 0
        %1423 = vmatpush1.bf16.xpose.msra.mxu0 %v1418
        %1424 = vmatprep.subr.bf16.mxu0 0
        %1425 = vmatpush1.bf16.xpose.msra.mxu0 0
        %1426 = vmatprep.subr.bf16.mxu0 0
        %1427 = vmatpush1.bf16.xpose.msra.mxu0 0
        %1428 = vmatprep.subr.bf16.mxu0 0
        %1429 = vmatpush1.bf16.xpose.msra.mxu0 0
        %1430 = vmatprep.subr.bf16.mxu0 0
        %1431 = vmatpush1.bf16.xpose.msra.mxu0 0
        %1432 = vmatprep.subr.bf16.mxu0 0
        %1433 = vmatpush1.bf16.xpose.msra.mxu0 0
        %1434 = vmatprep.subr.bf16.mxu0 0
        %1435 = vmatpush1.bf16.xpose.msra.mxu0 0
        %1436 = vmatprep.subr.bf16.mxu0 0
        %1437 = vmatpush1.bf16.xpose.msra.mxu0 0
        %1438 = vmatprep.subr.bf16.mxu0 0
        %1439 = vmatpush1.bf16.xpose.msra.mxu0 0
        %1440 = vmatprep.subr.bf16.mxu0 0
        %1441 = vmatpush1.bf16.xpose.msra.mxu0 0
        %1442 = vmatprep.subr.bf16.mxu0 0
        %1443 = vmatpush1.bf16.xpose.msra.mxu0 0
        %1444 = vmatprep.subr.bf16.mxu0 0
        %1445 = vmatpush1.bf16.xpose.msra.mxu0 0
        %1446 = vmatprep.subr.bf16.mxu0 0
        %1447 = vmatpush1.bf16.xpose.msra.mxu0 0
        %1448 = vmatprep.subr.bf16.mxu0 0
        %1449 = vmatpush1.bf16.xpose.msra.mxu0 0
        %1450 = vmatprep.subr.bf16.mxu0 0
        %1451 = vmatpush1.bf16.xpose.msra.mxu0 0
        %1452 = vmatprep.mubr.bf16.mxu0 0
        %1453 = vmatmul.mubr.bf16.gmra.mrb[0].mxu0 %v1412
        %v1454 = vpop.f32.mrb[0].mxu0
        %v1455 = vadd.f32 0.0, %v1454
        %v1456 = vpop.f32.mrb[0].mxu0
        %v1457 = vpop.f32.mrb[0].mxu0
        %v1458 = vpop.f32.mrb[0].mxu0
        %1459 = vdwg.mxu0
        %v1464 = vunpack.c.l.b16 %v1279
        %v1465 = vunpack.c.l.b16 %v1280
        %v1466 = vunpack.c.l.b16 %v1281
        %v1467 = vunpack.c.l.b16 %v1282
        %v1468 = vpack.c.b16 %v1465, %v1464
        %v1469 = vpack.c.b16 %v1467, %v1466
        %v1471 = vsel %vm601, %v1266, 0
        %v1474 = vsel %vm601, %v1468, 0
        %v1477 = vsel %vm601, %v1469, 0
        %1479 = vmatprep.subr.bf16.mxu0 0
        %1480 = vmatpush1.bf16.xpose.msra.mxu0 %v1474
        %1481 = vmatprep.subr.bf16.mxu0 0
        %1482 = vmatpush1.bf16.xpose.msra.mxu0 %v1477
        %1483 = vmatprep.subr.bf16.mxu0 0
        %1484 = vmatpush1.bf16.xpose.msra.mxu0 0
        %1485 = vmatprep.subr.bf16.mxu0 0
        %1486 = vmatpush1.bf16.xpose.msra.mxu0 0
        %1487 = vmatprep.subr.bf16.mxu0 0
        %1488 = vmatpush1.bf16.xpose.msra.mxu0 0
        %1489 = vmatprep.subr.bf16.mxu0 0
        %1490 = vmatpush1.bf16.xpose.msra.mxu0 0
        %1491 = vmatprep.subr.bf16.mxu0 0
        %1492 = vmatpush1.bf16.xpose.msra.mxu0 0
        %1493 = vmatprep.subr.bf16.mxu0 0
        %1494 = vmatpush1.bf16.xpose.msra.mxu0 0
        %1495 = vmatprep.subr.bf16.mxu0 0
        %1496 = vmatpush1.bf16.xpose.msra.mxu0 0
        %1497 = vmatprep.subr.bf16.mxu0 0
        %1498 = vmatpush1.bf16.xpose.msra.mxu0 0
        %1499 = vmatprep.subr.bf16.mxu0 0
        %1500 = vmatpush1.bf16.xpose.msra.mxu0 0
        %1501 = vmatprep.subr.bf16.mxu0 0
        %1502 = vmatpush1.bf16.xpose.msra.mxu0 0
        %1503 = vmatprep.subr.bf16.mxu0 0
        %1504 = vmatpush1.bf16.xpose.msra.mxu0 0
        %1505 = vmatprep.subr.bf16.mxu0 0
        %1506 = vmatpush1.bf16.xpose.msra.mxu0 0
        %1507 = vmatprep.subr.bf16.mxu0 0
        %1508 = vmatpush1.bf16.xpose.msra.mxu0 0
        %1509 = vmatprep.subr.bf16.mxu0 0
        %1510 = vmatpush1.bf16.xpose.msra.mxu0 0
        %1511 = vmatprep.mubr.bf16.mxu0 0
        %1512 = vmatmul.mubr.bf16.gmra.mrb[0].mxu0 %v1471
        %v1513 = vpop.f32.mrb[0].mxu0
        %v1514 = vadd.f32 0.0, %v1513
        %v1515 = vpop.f32.mrb[0].mxu0
        %v1516 = vpop.f32.mrb[0].mxu0
        %v1517 = vpop.f32.mrb[0].mxu0
        %1518 = vdwg.mxu0
        %v1519 = vsel %vm341, %v1337, 0.0
        %v1520 = vsel %vm341, %v1396, 0.0
        %v1521 = vadd.f32 %v1519, %v1520
        %v1522 = vsel %vm341, %v1455, 0.0
        %v1523 = vadd.f32 %v1521, %v1522
        %v1524 = vsel %vm341, %v1514, 0.0
        %v1525 = vadd.f32 %v1523, %v1524
        %v1526 = vlaneseq
        %v1527 = vshrl.u32 %v1526, 7
        %v1528 = vsub.s32 2, %v1527
        %v1529 = vrot.slane %v340, %v1528
        %v1530 = vadd.f32 %v1525, %v1529
        %v1531 = vadd.f32 %v335, %v1530
        %v1532 = vsel %vm341, %v1531, 0.0
        %1533 = vadd.xlane.f32.xlu0 %v1532
        %v1534 = vpop.xlane.xlu0 %1533
        %v1535 = vmul.f32 %v1534, %v345
        %v1536 = vsub.f32 %v1531, %v1535
        %v1537 = vmul.f32 %v1536, %v1536
        %v1538 = vsel %vm341, %v1537, 0.0
        %1539 = vadd.xlane.f32.xlu0 %v1538
        %v1540 = vpop.xlane.xlu0 %1539
        %v1541 = vmul.f32 %v1540, %v345
        %v1542 = vadd.f32 %v1541, 1e-05
        %v1543 = vrsqrt.pop %v1542
        %v1544 = vmul.f32 %v1536, %v1543
        %v1545 = vlaneseq
        %v1546 = vshrl.u32 %v1545, 7
        %v1547 = vsub.s32 3, %v1546
        %v1548 = vrot.slane %v340, %v1547
        %v1549 = vmul.f32 %v1544, %v1548
        %v1550 = vlaneseq
        %v1551 = vshrl.u32 %v1550, 7
        %v1552 = vsub.s32 4, %v1551
        %v1553 = vrot.slane %v340, %v1552
        %v1554 = vadd.f32 %v1549, %v1553
        %v1555 = vpack.c.bf16 %v1554, %v1554
        %v1556 = vld [vmem:[%s5] sm:$0xf]
        %v1557 = vld [vmem:[%s5 + $0x4] sm:$0xf]
        %v1558 = vld [vmem:[%s5 + $0x8] sm:$0xf]
        %v1559 = vld [vmem:[%s5 + $0xc] sm:$0xf]
        %v1560 = vld [vmem:[%s6] sm:$0x1]
        %v1562 = vlaneseq
        %v1563 = vshrl.u32 %v1562, 7
        %v1564 = vsub.s32 0, %v1563
        %v1565 = vrot.slane %v1560, %v1564
        %v1571 = vunpack.c.l.b16 %v1556
        %v1572 = vunpack.c.l.b16 %v1557
        %v1573 = vunpack.c.l.b16 %v1558
        %v1574 = vunpack.c.l.b16 %v1559
        %v1575 = vpack.c.b16 %v1572, %v1571
        %v1576 = vpack.c.b16 %v1574, %v1573
        %v1580 = vsel %vm341, %v1555, 0
        %1582 = vmatprep.subr.bf16.mxu0 0
        %1583 = vmatpush1.bf16.msra.mxu0 %v1575
        %1584 = vmatprep.subr.bf16.mxu0 0
        %1585 = vmatpush1.bf16.msra.mxu0 %v1576
        %1586 = vmatprep.subr.bf16.mxu0 0
        %1587 = vmatpush1.bf16.msra.mxu0 0
        %1588 = vmatprep.subr.bf16.mxu0 0
        %1589 = vmatpush1.bf16.msra.mxu0 0
        %1590 = vmatprep.subr.bf16.mxu0 0
        %1591 = vmatpush1.bf16.msra.mxu0 0
        %1592 = vmatprep.subr.bf16.mxu0 0
        %1593 = vmatpush1.bf16.msra.mxu0 0
        %1594 = vmatprep.subr.bf16.mxu0 0
        %1595 = vmatpush1.bf16.msra.mxu0 0
        %1596 = vmatprep.subr.bf16.mxu0 0
        %1597 = vmatpush1.bf16.msra.mxu0 0
        %1598 = vmatprep.subr.bf16.mxu0 0
        %1599 = vmatpush1.bf16.msra.mxu0 0
        %1600 = vmatprep.subr.bf16.mxu0 0
        %1601 = vmatpush1.bf16.msra.mxu0 0
        %1602 = vmatprep.subr.bf16.mxu0 0
        %1603 = vmatpush1.bf16.msra.mxu0 0
        %1604 = vmatprep.subr.bf16.mxu0 0
        %1605 = vmatpush1.bf16.msra.mxu0 0
        %1606 = vmatprep.subr.bf16.mxu0 0
        %1607 = vmatpush1.bf16.msra.mxu0 0
        %1608 = vmatprep.subr.bf16.mxu0 0
        %1609 = vmatpush1.bf16.msra.mxu0 0
        %1610 = vmatprep.subr.bf16.mxu0 0
        %1611 = vmatpush1.bf16.msra.mxu0 0
        %1612 = vmatprep.subr.bf16.mxu0 0
        %1613 = vmatpush1.bf16.msra.mxu0 0
        %1614 = vmatprep.mubr.bf16.mxu0 0
        %1615 = vmatmul.mubr.bf16.gmra.mrb[0].mxu0 %v1580
        %v1616 = vpop.f32.mrb[0].mxu0
        %v1617 = vadd.f32 %v1565, %v1616
        %v1618 = vpop.f32.mrb[0].mxu0
        %v1619 = vpop.f32.mrb[0].mxu0
        %v1620 = vpop.f32.mrb[0].mxu0
        %1621 = vdwg.mxu0
        %v1622 = vmul.f32 %v1617, 0.5
        %v1623 = vmul.f32 %v1617, 0.70710677
        %v1624 = verf.f32.pop %v1623
        %v1625 = vadd.f32 %v1624, 1.0
        %v1626 = vmul.f32 %v1622, %v1625
        %v1627 = vpack.c.bf16 %v1626, %v1626
        %v1628 = vld [vmem:[%s7] sm:$0xf]
        %v1629 = vld [vmem:[%s7 + $0x4] sm:$0xf]
        %v1630 = vld [vmem:[%s7 + $0x8] sm:$0xf]
        %v1631 = vld [vmem:[%s7 + $0xc] sm:$0xf]
        %v1632 = vld [vmem:[%s7 + $0x10] sm:$0xf]
        %v1633 = vld [vmem:[%s7 + $0x14] sm:$0xf]
        %v1634 = vld [vmem:[%s7 + $0x18] sm:$0xf]
        %v1635 = vld [vmem:[%s7 + $0x1c] sm:$0xf]
        %v1636 = vld [vmem:[%s7 + $0x20] sm:$0xf]
        %v1637 = vld [vmem:[%s7 + $0x24] sm:$0xf]
        %v1638 = vld [vmem:[%s7 + $0x28] sm:$0xf]
        %v1639 = vld [vmem:[%s7 + $0x2c] sm:$0xf]
        %v1640 = vld [vmem:[%s7 + $0x30] sm:$0xf]
        %v1641 = vld [vmem:[%s7 + $0x34] sm:$0xf]
        %v1642 = vld [vmem:[%s7 + $0x38] sm:$0xf]
        %v1643 = vld [vmem:[%s7 + $0x3c] sm:$0xf]
        %v1644 = vlaneseq
        %v1645 = vshrl.u32 %v1644, 7
        %v1646 = vsub.s32 5, %v1645
        %v1647 = vrot.slane %v340, %v1646
        %v1664 = vunpack.c.l.b16 %v1628
        %v1665 = vunpack.c.l.b16 %v1629
        %v1666 = vunpack.c.l.b16 %v1630
        %v1667 = vunpack.c.l.b16 %v1631
        %v1668 = vunpack.c.l.b16 %v1632
        %v1669 = vunpack.c.l.b16 %v1633
        %v1670 = vunpack.c.l.b16 %v1634
        %v1671 = vunpack.c.l.b16 %v1635
        %v1672 = vunpack.c.l.b16 %v1636
        %v1673 = vunpack.c.l.b16 %v1637
        %v1674 = vunpack.c.l.b16 %v1638
        %v1675 = vunpack.c.l.b16 %v1639
        %v1676 = vunpack.c.l.b16 %v1640
        %v1677 = vunpack.c.l.b16 %v1641
        %v1678 = vunpack.c.l.b16 %v1642
        %v1679 = vunpack.c.l.b16 %v1643
        %v1680 = vpack.c.b16 %v1665, %v1664
        %v1681 = vpack.c.b16 %v1667, %v1666
        %v1682 = vpack.c.b16 %v1669, %v1668
        %v1683 = vpack.c.b16 %v1671, %v1670
        %v1684 = vpack.c.b16 %v1673, %v1672
        %v1685 = vpack.c.b16 %v1675, %v1674
        %v1686 = vpack.c.b16 %v1677, %v1676
        %v1687 = vpack.c.b16 %v1679, %v1678
        %1696 = vmatprep.subr.bf16.mxu0 0
        %1697 = vmatpush1.bf16.msra.mxu0 %v1680
        %1698 = vmatprep.subr.bf16.mxu0 0
        %1699 = vmatpush1.bf16.msra.mxu0 %v1681
        %1700 = vmatprep.subr.bf16.mxu0 0
        %1701 = vmatpush1.bf16.msra.mxu0 %v1682
        %1702 = vmatprep.subr.bf16.mxu0 0
        %1703 = vmatpush1.bf16.msra.mxu0 %v1683
        %1704 = vmatprep.subr.bf16.mxu0 0
        %1705 = vmatpush1.bf16.msra.mxu0 %v1684
        %1706 = vmatprep.subr.bf16.mxu0 0
        %1707 = vmatpush1.bf16.msra.mxu0 %v1685
        %1708 = vmatprep.subr.bf16.mxu0 0
        %1709 = vmatpush1.bf16.msra.mxu0 %v1686
        %1710 = vmatprep.subr.bf16.mxu0 0
        %1711 = vmatpush1.bf16.msra.mxu0 %v1687
        %1712 = vmatprep.subr.bf16.mxu0 0
        %1713 = vmatpush1.bf16.msra.mxu0 0
        %1714 = vmatprep.subr.bf16.mxu0 0
        %1715 = vmatpush1.bf16.msra.mxu0 0
        %1716 = vmatprep.subr.bf16.mxu0 0
        %1717 = vmatpush1.bf16.msra.mxu0 0
        %1718 = vmatprep.subr.bf16.mxu0 0
        %1719 = vmatpush1.bf16.msra.mxu0 0
        %1720 = vmatprep.subr.bf16.mxu0 0
        %1721 = vmatpush1.bf16.msra.mxu0 0
        %1722 = vmatprep.subr.bf16.mxu0 0
        %1723 = vmatpush1.bf16.msra.mxu0 0
        %1724 = vmatprep.subr.bf16.mxu0 0
        %1725 = vmatpush1.bf16.msra.mxu0 0
        %1726 = vmatprep.subr.bf16.mxu0 0
        %1727 = vmatpush1.bf16.msra.mxu0 0
        %1728 = vmatprep.mubr.bf16.mxu0 0
        %1729 = vmatmul.mubr.bf16.gmra.mrb[0].mxu0 %v1627
        %v1730 = vpop.f32.mrb[0].mxu0
        %v1731 = vadd.f32 %v1647, %v1730
        %v1732 = vpop.f32.mrb[0].mxu0
        %v1733 = vpop.f32.mrb[0].mxu0
        %v1734 = vpop.f32.mrb[0].mxu0
        %1735 = vdwg.mxu0
        %v1736 = vadd.f32 %v1531, %v1731
        %1737 = vst.msk [vmem:[%s324] sm:$0xff] %vm341, %v1736
        %s1738 = sand.u32 %s209, 1
        %s1739 = scalar_lea.sflag [#allocation4], %s1738
        %s1740 = sand.u32 %s209, 1
        %s1741 = smul.addr %s1740, 8
        %s1742 = scalar_lea.vmem [#allocation5], %s1741
        // Predicated region
        $region57: #{tpu_custom_call.1} parent=51 // pred_check
          %p1743 = pneg %p219
        $region58: #{tpu_custom_call.1} parent=51 // pred_check_branch
          %1745 = sbr.rel (%p1743) target = $region60
        $region59: #{tpu_custom_call.1} parent=51 // pred_region
          %s1747 = ssub.s32 128, 128
          %1748 = vsyncadd %s1739, %s1747
          %s1749 = smul.addr %s23, 128
          %s1750 = scalar_lea.hbm %s8, %s1749
          %s1752 = sshll.u32 %s1742, 4
          %s1753 = int_to_ptr.vmem [resolvable:$true] %s1752
          %1755 = dma.vmem_to_hbm [thread:$0]  %s1753, 128, %s1750, %s1739
        $region60: #{tpu_custom_call.1} parent=51 // pred_fallthru
          _
      $region52: #{tpu_custom_call.1} parent=5 // pred_fallthru
        _
      %p1756 = scmp.le.s32.totalorder 2, %s18
      // Predicated region
      $region61: #{tpu_custom_call.1} parent=5 // pred_check
        %p1757 = pneg %p1756
      $region62: #{tpu_custom_call.1} parent=5 // pred_check_branch
        %1759 = sbr.rel (%p1757) target = $region64
      $region63: #{tpu_custom_call.1} parent=5 // pred_region
        %s1760 = ssub.s32 %s18, 2
        // Predicated region
        $region65: #{tpu_custom_call.1} parent=63 // pred_check
          %p1761 = pneg %p225
        $region66: #{tpu_custom_call.1} parent=63 // pred_check_branch
          %1763 = sbr.rel (%p1761) target = $region68
        $region67: #{tpu_custom_call.1} parent=63 // pred_region
          %s1764 = sand.u32 %s210, 1
          %s1765 = scalar_lea.sflag [#allocation4], %s1764
          %s1766 = sand.u32 %s210, 1
          %s1767 = smul.addr %s1766, 8
          %s1768 = scalar_lea.vmem [#allocation5], %s1767
          %1769 = dma.done %s1765, 128
        $region68: #{tpu_custom_call.1} parent=63 // pred_fallthru
          _
      $region64: #{tpu_custom_call.1} parent=5 // pred_fallthru
        _
    $region6: #{tpu_custom_call.1} parent=1 // loop_footer
      %s22 = sadd.s32 1, %s18
    $region7: #{tpu_custom_call.1} parent=1 // loop_footer_branch
      %17 = sbr.rel target = $region3
    $region8: #{tpu_custom_call.1} parent=1 // loop_exit
      _
    %1770 = vsyncpa [#allocation3], 1
    %s1771 = scalar_lea.sflag [#allocation3], 1
    %1772 = vsyncpa %s1771, 1
    %1773 = vsyncpa [#allocation4], 1
    %s1774 = scalar_lea.sflag [#allocation4], 1
    %1775 = vsyncpa %s1774, 1

</llo_original>
